<compile_context>
chip_gen: v5e
topology: v5e:2x2
jax: 0.10.0
libtpu: 0.0.40
codegen_flags: <defaults>
</compile_context>

<pallas_src>
import numpy as np
import jax
import jax.numpy as jnp
from jax.experimental import pallas as pl
from jax.experimental.pallas import tpu as pltpu

NEG_BIG = -1e30
FPAD = 128          # padded lane width for every feature dimension
TN = 128            # node-tile size (rows per grid step)
_VMEM = pl.BlockSpec(memory_space=pltpu.MemorySpace.VMEM)


# ------------------------------ helpers -------------------------------------

def _pad2(a, rows, cols):
    a = jnp.asarray(a, jnp.float32)
    out = jnp.zeros((rows, cols), jnp.float32)
    return out.at[:a.shape[0], :a.shape[1]].set(a)


def build_ell(src, dst, edge_attr, n):
    """Host-side graph preprocessing: CSR-style edge list -> padded neighbour
    list [D_max, N] (nbr index, edge_attr, validity)."""
    src = np.asarray(src)
    dst = np.asarray(dst)
    e = src.shape[0]
    deg = np.bincount(dst, minlength=n)
    d_max = max(1, int(deg.max()))
    nbr = np.zeros((d_max, n), np.int32)
    ea = np.zeros((d_max, n), np.float32)
    valid = np.zeros((d_max, n), np.float32)
    slot = np.zeros(n, np.int64)
    ea_np = np.zeros(e, np.float32) if edge_attr is None else np.asarray(edge_attr, np.float32)
    for k in range(e):
        i = int(dst[k])
        s = int(slot[i])
        slot[i] = s + 1
        nbr[s, i] = int(src[k])
        ea[s, i] = ea_np[k]
        valid[s, i] = 1.0
    return d_max, nbr, ea, valid


# ----------------------------- Pallas kernels -------------------------------

def make_conv_pool_kernel(d_max):
    """Fused per-layer kernel: per-slot message MLP (split-W1, BN folded),
    running max over the D_max neighbour slots, model-level ReLU, and the
    global_mean_pool epilogue (pre-scaled pool matrix)."""
    def kernel(xi_ref, xj_ref, valid_ref, pool_ref,
               a_ref, bm_ref, b1_ref, w2_ref, b2_ref, w3_ref, b3_ref,
               s3_ref, t3_ref, h_ref, pooled_ref):
        # layer-1 contribution that only depends on x_i (shared by all slots)
        pre_i = jnp.dot(xi_ref[...], bm_ref[...],
                        preferred_element_type=jnp.float32) + b1_ref[...]
        agg = None
        for d in range(d_max):                       # static, small (max in-degree)
            z = jnp.dot(xj_ref[d], a_ref[...],
                        preferred_element_type=jnp.float32) + pre_i
            h = jnp.maximum(z, 0.0)                                       # Lin1+ReLU (BN1 folded into W2)
            h = jnp.maximum(jnp.dot(h, w2_ref[...],
                                    preferred_element_type=jnp.float32) + b2_ref[...], 0.0)
            h = jnp.maximum(jnp.dot(h, w3_ref[...],
                                    preferred_element_type=jnp.float32) + b3_ref[...], 0.0)
            h = h * s3_ref[...] + t3_ref[...]                             # BN3 eval affine
            h = jnp.where(valid_ref[d] > 0.5, h, NEG_BIG)                 # mask padded slots
            agg = h if agg is None else jnp.maximum(agg, h)               # running max (aggr='max')
        node_out = jnp.maximum(agg, 0.0)             # F.relu(conv(...)); also clamps empty nodes
        h_ref[...] = node_out
        pooled_ref[0] = jnp.dot(pool_ref[...], node_out,
                                preferred_element_type=jnp.float32)       # fused mean pool
    return kernel


def make_head_kernel(num_classes):
    """lin1 -> ReLU -> dropout(eval identity) -> lin2 -> log_softmax over the
    real class lanes only (padded lanes masked)."""
    def kernel(x_ref, w1_ref, b1_ref, w2_ref, b2_ref, o_ref):
        h = jnp.maximum(jnp.dot(x_ref[...], w1_ref[...],
                                preferred_element_type=jnp.float32) + b1_ref[...], 0.0)
        z = jnp.dot(h, w2_ref[...], preferred_element_type=jnp.float32) + b2_ref[...]
        lane = jax.lax.broadcasted_iota(jnp.int32, z.shape, 1)
        zm = jnp.where(lane < num_classes, z, NEG_BIG)
        m = jnp.max(zm, axis=-1, keepdims=True)
        e = jnp.where(lane < num_classes, jnp.exp(zm - m), 0.0)
        lse = jnp.log(jnp.sum(e, axis=-1, keepdims=True)) + m
        o_ref[...] = zm - lse
    return kernel


# ----------------------------- Pallas wrappers ------------------------------

def conv_pool(xi_pad, xj_pad, valid_pad, pool_pad, kparams, d_max):
    n_pad = xi_pad.shape[0]
    bg_pad = pool_pad.shape[0]
    n_tiles = n_pad // TN
    a, bm, b1, w2, b2, w3, b3, s3, t3 = kparams

    wspec = pl.BlockSpec((FPAD, FPAD), lambda i: (0, 0))
    vspec = pl.BlockSpec((1, FPAD), lambda i: (0, 0))

    h, pooled = pl.pallas_call(
        make_conv_pool_kernel(d_max),
        out_shape=(jax.ShapeDtypeStruct((n_pad, FPAD), jnp.float32),
                   jax.ShapeDtypeStruct((n_tiles, bg_pad, FPAD), jnp.float32)),
        grid=(n_tiles,),
        in_specs=[
            pl.BlockSpec((TN, FPAD), lambda i: (i, 0)),             # x_i node tile
            pl.BlockSpec((d_max, TN, FPAD), lambda i: (0, i, 0)),   # gathered x_j per slot
            pl.BlockSpec((d_max, TN, 1), lambda i: (0, i, 0)),      # slot validity
            pl.BlockSpec((bg_pad, TN), lambda i: (0, i)),           # pre-scaled pool matrix
            wspec, wspec, vspec,                                    # A, B, b1
            wspec, vspec,                                           # W2', b2'
            wspec, vspec,                                           # W3', b3'
            vspec, vspec,                                           # s3, t3
        ],
        out_specs=(pl.BlockSpec((TN, FPAD), lambda i: (i, 0)),
                   pl.BlockSpec((1, bg_pad, FPAD), lambda i: (i, 0, 0))),
        compiler_params=pltpu.CompilerParams(
            dimension_semantics=("parallel",),
            vmem_limit_bytes=32 * 1024 * 1024),
    )(xi_pad, xj_pad, valid_pad, pool_pad, a, bm, b1, w2, b2, w3, b3, s3, t3)

    return h, jnp.sum(pooled, axis=0)   # tiny partial-pool reduce over node tiles


def head(xcat_pad, w1p, b1p, w2p, b2p, num_classes):
    bg_pad = xcat_pad.shape[0]
    return pl.pallas_call(
        make_head_kernel(num_classes),
        out_shape=jax.ShapeDtypeStruct((bg_pad, FPAD), jnp.float32),
        in_specs=[_VMEM] * 5,
        out_specs=_VMEM,
        compiler_params=pltpu.CompilerParams(vmem_limit_bytes=32 * 1024 * 1024),
    )(xcat_pad, w1p, b1p, w2p, b2p)


# ----------------------------- parameter setup ------------------------------

def init_linear(key, fan_in, fan_out, scale=0.1):
    kw, kb = jax.random.split(key)
    w = jax.random.normal(kw, (fan_in, fan_out), jnp.float32) * scale
    b = jax.random.normal(kb, (1, fan_out), jnp.float32) * scale
    return w, b


def init_mlp(key, channels):
    """MLP([c0,c1,...]) = Seq(Lin, ReLU, BatchNorm1d) per step.  BatchNorm is in
    eval mode with fresh running stats folded into an affine (scale, shift)."""
    eps = 1e-5
    layers = []
    for i in range(1, len(channels)):
        key, k1, k2, k3 = jax.random.split(key, 4)
        w, b = init_linear(k1, channels[i - 1], channels[i])
        gamma = 1.0 + 0.05 * jax.random.normal(k2, (1, channels[i]), jnp.float32)
        beta = 0.05 * jax.random.normal(k3, (1, channels[i]), jnp.float32)
        run_mean = jnp.zeros((1, channels[i]), jnp.float32)
        run_var = jnp.ones((1, channels[i]), jnp.float32)
        scale = gamma / jnp.sqrt(run_var + eps)
        shift = beta - run_mean * scale
        layers.append((w, b, scale, shift))
    return layers


def prepare_conv_kernel_params(mlp_layers, c_node, has_edge_attr):
    """Fold BN1->Lin2 and BN2->Lin3, split W1 so the message concat never has
    to be materialised, and zero-pad everything to 128 lanes (exact)."""
    (w1, b1, s1, t1), (w2, b2, s2, t2), (w3, b3, s3, t3) = mlp_layers
    hid = w1.shape[1]
    off = 1 if has_edge_attr else 0
    w_d = w1[off:off + c_node]                 # multiplies (x_j - x_i)
    w_i = w1[off + c_node:off + 2 * c_node]    # multiplies x_i
    a = jnp.zeros((FPAD, FPAD), jnp.float32).at[:c_node, :hid].set(w_d)
    if has_edge_attr:
        a = a.at[c_node, :hid].set(w1[0])      # edge_attr lives in lane c_node of x_j
    bm = jnp.zeros((FPAD, FPAD), jnp.float32).at[:c_node, :hid].set(w_i - w_d)
    # BN folding into the *next* linear (never across the max aggregation)
    w2f = w2 * jnp.reshape(s1, (-1, 1))
    b2f = t1 @ w2 + b2
    w3f = w3 * jnp.reshape(s2, (-1, 1))
    b3f = t2 @ w3 + b3
    return (a, bm, _pad2(b1, 1, FPAD),
            _pad2(w2f, FPAD, FPAD), _pad2(b2f, 1, FPAD),
            _pad2(w3f, FPAD, FPAD), _pad2(b3f, 1, FPAD),
            _pad2(s3, 1, FPAD), _pad2(t3, 1, FPAD))


# ----------------------------- forward (glue) -------------------------------

def asap_forward(params, x, pos, edge_attr, src, dst, batch, num_graphs):
    n = x.shape[0]
    hidden = params["hidden"]
    num_classes = params["num_classes"]
    n_pad = ((n + TN - 1) // TN) * TN
    bg_pad = max(8, ((num_graphs + 7) // 8) * 8)

    # graph structure -> padded neighbour-list layout (host-side, once)
    d_max, nbr_np, ea_np, valid_np = build_ell(src, dst, edge_attr, n)
    nbr = jnp.zeros((d_max, n_pad), jnp.int32).at[:, :n].set(jnp.asarray(nbr_np))
    ea_ell = jnp.zeros((d_max, n_pad), jnp.float32).at[:, :n].set(jnp.asarray(ea_np))
    valid = jnp.zeros((d_max, n_pad, 1), jnp.float32).at[:, :n, 0].set(jnp.asarray(valid_np))

    # global_mean_pool as a pre-scaled [B_pad, N_pad] matrix (fused into epilogue)
    batch_np = np.asarray(batch)
    counts = np.bincount(batch_np, minlength=num_graphs).astype(np.float32)
    pool_np = np.zeros((bg_pad, n_pad), np.float32)
    pool_np[batch_np, np.arange(n)] = 1.0 / counts[batch_np]
    pool = jnp.asarray(pool_np)

    def layer_inputs(node_feat, c_node, ea_or_none):
        # x = cat((pos, x), 1) per CustomEdgeConv*/forward
        xc = jnp.concatenate([pos, node_feat], axis=1)          # [n, c_node]
        xi = jnp.zeros((n_pad, FPAD), jnp.float32).at[:n, :c_node].set(xc)
        xj = xi[nbr]                                            # [d_max, n_pad, FPAD]
        if ea_or_none is not None:
            xj = xj.at[:, :, c_node].set(ea_or_none)            # edge_attr lane
        return xi, xj

    # conv1 (+ relu + pool)
    c_node1 = pos.shape[1] + x.shape[1]
    k1 = prepare_conv_kernel_params(params["conv1"], c_node1, has_edge_attr=True)
    xi, xj = layer_inputs(x, c_node1, ea_ell)
    h, p0 = conv_pool(xi, xj, valid, pool, k1, d_max)
    xs = [p0[:num_graphs, :hidden]]

    # weighted convs (edge_weight stays None; ASAPooling branch never invoked)
    c_node2 = pos.shape[1] + hidden
    for conv_raw in params["convs"]:
        kp = prepare_conv_kernel_params(conv_raw, c_node2, has_edge_attr=False)
        xi, xj = layer_inputs(h[:n, :hidden], c_node2, None)
        h, pk = conv_pool(xi, xj, valid, pool, kp, d_max)
        xs.append(pk[:num_graphs, :hidden])

    # JumpingKnowledge(mode='cat') -> head
    xcat = jnp.concatenate(xs, axis=-1)
    xcat_pad = jnp.zeros((bg_pad, FPAD), jnp.float32).at[:num_graphs, :xcat.shape[1]].set(xcat)
    w1, b1, w2, b2 = params["head"]
    out_pad = head(xcat_pad, _pad2(w1, FPAD, FPAD), _pad2(b1, 1, FPAD),
                   _pad2(w2, FPAD, FPAD), _pad2(b2, 1, FPAD), num_classes)
    return out_pad[:num_graphs, :num_classes]


# ----------------------------- pure-JAX reference ---------------------------

def ref_forward(params, x, pos, edge_attr, src, dst, batch, num_graphs):
    n = x.shape[0]

    def mlp_apply(h, layers):
        for w, b, s, t in layers:
            h = jnp.maximum(h @ w + b, 0.0) * s + t
        return h

    def conv_ref(msg, layers):
        h = mlp_apply(msg, layers)
        agg = jax.ops.segment_max(h, dst, num_segments=n)
        return jnp.maximum(agg, 0.0)

    def pool_ref(h):
        s = jax.ops.segment_sum(h, batch, num_segments=num_graphs)
        cnt = jax.ops.segment_sum(jnp.ones((n, 1), jnp.float32), batch, num_segments=num_graphs)
        return s / cnt

    def messages_conv1(xf):
        xc = jnp.concatenate([pos, xf], axis=1)
        return jnp.concatenate([edge_attr[:, None], xc[src] - xc[dst], xc[dst]], axis=1)

    def messages_weighted(xf):
        xc = jnp.concatenate([pos, xf], axis=1)
        return jnp.concatenate([xc[src] - xc[dst], xc[dst]], axis=1)

    h = conv_ref(messages_conv1(x), params["conv1"])
    xs = [pool_ref(h)]
    for layers in params["convs"]:
        h = conv_ref(messages_weighted(h), layers)
        xs.append(pool_ref(h))
    xcat = jnp.concatenate(xs, axis=-1)
    w1, b1, w2, b2 = params["head"]
    z = jnp.maximum(xcat @ w1 + b1, 0.0) @ w2 + b2
    return jax.nn.log_softmax(z, axis=-1)


# ----------------------------------- main ------------------------------------

if __name__ == "__main__":
    hidden = 32
    num_classes = 5
    num_layers = 2            # -> 1 CustomEdgeConvWeighted, pooling branch never taken
    num_graphs = 2
    nodes_per_graph = 8
    n_nodes = num_graphs * nodes_per_graph
    dx = 3                    # data.x feature dim (pos is always 3-D)

    # deterministic ring graph: each node receives edges from its next 2 neighbours
    src_l, dst_l = [], []
    for g in range(num_graphs):
        off = g * nodes_per_graph
        for i in range(nodes_per_graph):
            for d in (1, 2):
                src_l.append(off + (i + d) % nodes_per_graph)
                dst_l.append(off + i)
    src = jnp.array(src_l, jnp.int32)
    dst = jnp.array(dst_l, jnp.int32)
    n_edges = src.shape[0]
    batch = jnp.repeat(jnp.arange(num_graphs, dtype=jnp.int32), nodes_per_graph)

    key = jax.random.PRNGKey(0)
    kx, kp, ke, kparam = jax.random.split(key, 4)
    x = jax.random.normal(kx, (n_nodes, dx), jnp.float32)
    pos = jax.random.normal(kp, (n_nodes, 3), jnp.float32)
    edge_attr = jax.random.normal(ke, (n_edges,), jnp.float32)

    # parameter shapes implied by the module:
    #   conv1 MLP in  = 1 (edge_attr) + 2*(3 + dx)          (message dim)
    #   convs MLP in  = 2*(3 + hidden)
    #   lin1: num_layers*hidden -> hidden ; lin2: hidden -> num_classes
    mlp_hidden = [hidden, hidden, hidden]       # mlp_num_hidden_layers = 3
    conv1_in = 1 + 2 * (3 + dx)
    convw_in = 2 * (3 + hidden)

    k1, k2, k3, k4 = jax.random.split(kparam, 4)
    conv_keys = jax.random.split(k2, max(num_layers - 1, 1))
    w1, b1 = init_linear(k3, num_layers * hidden, hidden)
    w2, b2 = init_linear(k4, hidden, num_classes)
    params = {
        "conv1": init_mlp(k1, [conv1_in] + mlp_hidden),
        "convs": [init_mlp(conv_keys[i], [convw_in] + mlp_hidden)
                  for i in range(num_layers - 1)],
        "head": (w1, b1, w2, b2),
        "hidden": hidden,
        "num_classes": num_classes,
    }

    out = asap_forward(params, x, pos, edge_attr, src, dst, batch, num_graphs)
    out = jax.block_until_ready(out)

    ref = ref_forward(params, x, pos, edge_attr, src, dst, batch, num_graphs)
    assert out.shape == (num_graphs, num_classes)
    if not np.allclose(np.asarray(out), np.asarray(ref), atol=2e-3, rtol=2e-3):
        raise AssertionError("Pallas output does not match pure-JAX reference")

    print("KERNEL_OK")
</pallas_src>

<mosaic_0001>
module attributes {stable_mosaic.version = 11 : i64} {
  func.func @kernel(%arg0: i32, %arg1: memref<128x128xf32, #tpu.memory_space<vmem>>, %arg2: memref<2x128x128xf32, #tpu.memory_space<vmem>>, %arg3: memref<2x128x1xf32, #tpu.memory_space<vmem>>, %arg4: memref<8x128xf32, #tpu.memory_space<vmem>>, %arg5: memref<128x128xf32, #tpu.memory_space<vmem>>, %arg6: memref<128x128xf32, #tpu.memory_space<vmem>>, %arg7: memref<1x128xf32, #tpu.memory_space<vmem>>, %arg8: memref<128x128xf32, #tpu.memory_space<vmem>>, %arg9: memref<1x128xf32, #tpu.memory_space<vmem>>, %arg10: memref<128x128xf32, #tpu.memory_space<vmem>>, %arg11: memref<1x128xf32, #tpu.memory_space<vmem>>, %arg12: memref<1x128xf32, #tpu.memory_space<vmem>>, %arg13: memref<1x128xf32, #tpu.memory_space<vmem>>, %arg14: memref<128x128xf32, #tpu.memory_space<vmem>>, %arg15: memref<1x8x128xf32, #tpu.memory_space<vmem>>) attributes {dimension_semantics = [#tpu.dimension_semantics<parallel>], iteration_bounds = array<i64: 1>, scalar_prefetch = 0 : i64, scratch_operands = 0 : i64, tpu.core_type = #tpu.core_type<tc>, window_params = [{transform_indices = @transform_0, window_bounds = array<i64: 128, 128>}, {transform_indices = @transform_1, window_bounds = array<i64: 2, 128, 128>}, {transform_indices = @transform_2, window_bounds = array<i64: 2, 128, 1>}, {transform_indices = @transform_3, window_bounds = array<i64: 8, 128>}, {pipeline_mode = #tpu.pipeline_mode<synchronous>, transform_indices = @transform_4, window_bounds = array<i64: 128, 128>}, {pipeline_mode = #tpu.pipeline_mode<synchronous>, transform_indices = @transform_5, window_bounds = array<i64: 128, 128>}, {pipeline_mode = #tpu.pipeline_mode<synchronous>, transform_indices = @transform_6, window_bounds = array<i64: 1, 128>}, {pipeline_mode = #tpu.pipeline_mode<synchronous>, transform_indices = @transform_7, window_bounds = array<i64: 128, 128>}, {pipeline_mode = #tpu.pipeline_mode<synchronous>, transform_indices = @transform_8, window_bounds = array<i64: 1, 128>}, {pipeline_mode = #tpu.pipeline_mode<synchronous>, transform_indices = @transform_9, window_bounds = array<i64: 128, 128>}, {pipeline_mode = #tpu.pipeline_mode<synchronous>, transform_indices = @transform_10, window_bounds = array<i64: 1, 128>}, {pipeline_mode = #tpu.pipeline_mode<synchronous>, transform_indices = @transform_11, window_bounds = array<i64: 1, 128>}, {pipeline_mode = #tpu.pipeline_mode<synchronous>, transform_indices = @transform_12, window_bounds = array<i64: 1, 128>}, {transform_indices = @transform_13, window_bounds = array<i64: 128, 128>}, {transform_indices = @transform_14, window_bounds = array<i64: 1, 8, 128>}]} {
    %c0 = arith.constant 0 : index
    %c0_0 = arith.constant 0 : index
    %0 = vector.load %arg1[%c0, %c0_0] : memref<128x128xf32, #tpu.memory_space<vmem>>, vector<128x128xf32>
    %c0_1 = arith.constant 0 : index
    %c0_2 = arith.constant 0 : index
    %1 = vector.load %arg6[%c0_1, %c0_2] : memref<128x128xf32, #tpu.memory_space<vmem>>, vector<128x128xf32>
    %cst = arith.constant dense<0.000000e+00> : vector<128x128xf32>
    %2 = tpu.matmul %0, %1, %cst {dimension_numbers = #tpu.dot_dimension_numbers<[1], [0], [0], [1], [0, 0, 1, 1], [], []>} : vector<128x128xf32>, vector<128x128xf32>, vector<128x128xf32> -> vector<128x128xf32>
    %c0_3 = arith.constant 0 : index
    %c0_4 = arith.constant 0 : index
    %3 = vector.load %arg7[%c0_3, %c0_4] : memref<1x128xf32, #tpu.memory_space<vmem>>, vector<1x128xf32>
    %4 = vector.broadcast %3 : vector<1x128xf32> to vector<128x128xf32>
    %5 = arith.addf %2, %4 : vector<128x128xf32>
    %c0_5 = arith.constant 0 : index
    %c0_6 = arith.constant 0 : index
    %c0_7 = arith.constant 0 : index
    %6 = vector.load %arg2[%c0_5, %c0_6, %c0_7] : memref<2x128x128xf32, #tpu.memory_space<vmem>>, vector<1x128x128xf32>
    %7 = vector.shape_cast %6 : vector<1x128x128xf32> to vector<128x128xf32>
    %c0_8 = arith.constant 0 : index
    %c0_9 = arith.constant 0 : index
    %8 = vector.load %arg5[%c0_8, %c0_9] : memref<128x128xf32, #tpu.memory_space<vmem>>, vector<128x128xf32>
    %cst_10 = arith.constant dense<0.000000e+00> : vector<128x128xf32>
    %9 = tpu.matmul %7, %8, %cst_10 {dimension_numbers = #tpu.dot_dimension_numbers<[1], [0], [0], [1], [0, 0, 1, 1], [], []>} : vector<128x128xf32>, vector<128x128xf32>, vector<128x128xf32> -> vector<128x128xf32>
    %10 = arith.addf %9, %5 : vector<128x128xf32>
    %cst_11 = arith.constant 0.000000e+00 : f32
    %11 = vector.broadcast %cst_11 : f32 to vector<128x128xf32>
    %12 = arith.maximumf %10, %11 : vector<128x128xf32>
    %c0_12 = arith.constant 0 : index
    %c0_13 = arith.constant 0 : index
    %13 = vector.load %arg8[%c0_12, %c0_13] : memref<128x128xf32, #tpu.memory_space<vmem>>, vector<128x128xf32>
    %cst_14 = arith.constant dense<0.000000e+00> : vector<128x128xf32>
    %14 = tpu.matmul %12, %13, %cst_14 {dimension_numbers = #tpu.dot_dimension_numbers<[1], [0], [0], [1], [0, 0, 1, 1], [], []>} : vector<128x128xf32>, vector<128x128xf32>, vector<128x128xf32> -> vector<128x128xf32>
    %c0_15 = arith.constant 0 : index
    %c0_16 = arith.constant 0 : index
    %15 = vector.load %arg9[%c0_15, %c0_16] : memref<1x128xf32, #tpu.memory_space<vmem>>, vector<1x128xf32>
    %16 = vector.broadcast %15 : vector<1x128xf32> to vector<128x128xf32>
    %17 = arith.addf %14, %16 : vector<128x128xf32>
    %cst_17 = arith.constant 0.000000e+00 : f32
    %18 = vector.broadcast %cst_17 : f32 to vector<128x128xf32>
    %19 = arith.maximumf %17, %18 : vector<128x128xf32>
    %c0_18 = arith.constant 0 : index
    %c0_19 = arith.constant 0 : index
    %20 = vector.load %arg10[%c0_18, %c0_19] : memref<128x128xf32, #tpu.memory_space<vmem>>, vector<128x128xf32>
    %cst_20 = arith.constant dense<0.000000e+00> : vector<128x128xf32>
    %21 = tpu.matmul %19, %20, %cst_20 {dimension_numbers = #tpu.dot_dimension_numbers<[1], [0], [0], [1], [0, 0, 1, 1], [], []>} : vector<128x128xf32>, vector<128x128xf32>, vector<128x128xf32> -> vector<128x128xf32>
    %c0_21 = arith.constant 0 : index
    %c0_22 = arith.constant 0 : index
    %22 = vector.load %arg11[%c0_21, %c0_22] : memref<1x128xf32, #tpu.memory_space<vmem>>, vector<1x128xf32>
    %23 = vector.broadcast %22 : vector<1x128xf32> to vector<128x128xf32>
    %24 = arith.addf %21, %23 : vector<128x128xf32>
    %cst_23 = arith.constant 0.000000e+00 : f32
    %25 = vector.broadcast %cst_23 : f32 to vector<128x128xf32>
    %26 = arith.maximumf %24, %25 : vector<128x128xf32>
    %c0_24 = arith.constant 0 : index
    %c0_25 = arith.constant 0 : index
    %27 = vector.load %arg12[%c0_24, %c0_25] : memref<1x128xf32, #tpu.memory_space<vmem>>, vector<1x128xf32>
    %28 = vector.broadcast %27 : vector<1x128xf32> to vector<128x128xf32>
    %29 = arith.mulf %26, %28 : vector<128x128xf32>
    %c0_26 = arith.constant 0 : index
    %c0_27 = arith.constant 0 : index
    %30 = vector.load %arg13[%c0_26, %c0_27] : memref<1x128xf32, #tpu.memory_space<vmem>>, vector<1x128xf32>
    %31 = vector.broadcast %30 : vector<1x128xf32> to vector<128x128xf32>
    %32 = arith.addf %29, %31 : vector<128x128xf32>
    %c0_28 = arith.constant 0 : index
    %c0_29 = arith.constant 0 : index
    %c0_30 = arith.constant 0 : index
    %33 = vector.load %arg3[%c0_28, %c0_29, %c0_30] : memref<2x128x1xf32, #tpu.memory_space<vmem>>, vector<1x128x1xf32>
    %34 = vector.shape_cast %33 : vector<1x128x1xf32> to vector<128x1xf32>
    %cst_31 = arith.constant 5.000000e-01 : f32
    %35 = vector.broadcast %cst_31 : f32 to vector<128x1xf32>
    %36 = arith.cmpf ogt, %34, %35 : vector<128x1xf32>
    %cst_32 = arith.constant -1.000000e+30 : f32
    %37 = vector.shape_cast %36 : vector<128x1xi1> to vector<128x1xi1>
    %38 = vector.broadcast %37 : vector<128x1xi1> to vector<128x128xi1>
    %39 = vector.broadcast %cst_32 : f32 to vector<128x128xf32>
    %40 = arith.select %38, %32, %39 : vector<128x128xi1>, vector<128x128xf32>
    %c1 = arith.constant 1 : index
    %c0_33 = arith.constant 0 : index
    %c0_34 = arith.constant 0 : index
    %41 = vector.load %arg2[%c1, %c0_33, %c0_34] : memref<2x128x128xf32, #tpu.memory_space<vmem>>, vector<1x128x128xf32>
    %42 = vector.shape_cast %41 : vector<1x128x128xf32> to vector<128x128xf32>
    %c0_35 = arith.constant 0 : index
    %c0_36 = arith.constant 0 : index
    %43 = vector.load %arg5[%c0_35, %c0_36] : memref<128x128xf32, #tpu.memory_space<vmem>>, vector<128x128xf32>
    %cst_37 = arith.constant dense<0.000000e+00> : vector<128x128xf32>
    %44 = tpu.matmul %42, %43, %cst_37 {dimension_numbers = #tpu.dot_dimension_numbers<[1], [0], [0], [1], [0, 0, 1, 1], [], []>} : vector<128x128xf32>, vector<128x128xf32>, vector<128x128xf32> -> vector<128x128xf32>
    %45 = arith.addf %44, %5 : vector<128x128xf32>
    %cst_38 = arith.constant 0.000000e+00 : f32
    %46 = vector.broadcast %cst_38 : f32 to vector<128x128xf32>
    %47 = arith.maximumf %45, %46 : vector<128x128xf32>
    %c0_39 = arith.constant 0 : index
    %c0_40 = arith.constant 0 : index
    %48 = vector.load %arg8[%c0_39, %c0_40] : memref<128x128xf32, #tpu.memory_space<vmem>>, vector<128x128xf32>
    %cst_41 = arith.constant dense<0.000000e+00> : vector<128x128xf32>
    %49 = tpu.matmul %47, %48, %cst_41 {dimension_numbers = #tpu.dot_dimension_numbers<[1], [0], [0], [1], [0, 0, 1, 1], [], []>} : vector<128x128xf32>, vector<128x128xf32>, vector<128x128xf32> -> vector<128x128xf32>
    %c0_42 = arith.constant 0 : index
    %c0_43 = arith.constant 0 : index
    %50 = vector.load %arg9[%c0_42, %c0_43] : memref<1x128xf32, #tpu.memory_space<vmem>>, vector<1x128xf32>
    %51 = vector.broadcast %50 : vector<1x128xf32> to vector<128x128xf32>
    %52 = arith.addf %49, %51 : vector<128x128xf32>
    %cst_44 = arith.constant 0.000000e+00 : f32
    %53 = vector.broadcast %cst_44 : f32 to vector<128x128xf32>
    %54 = arith.maximumf %52, %53 : vector<128x128xf32>
    %c0_45 = arith.constant 0 : index
    %c0_46 = arith.constant 0 : index
    %55 = vector.load %arg10[%c0_45, %c0_46] : memref<128x128xf32, #tpu.memory_space<vmem>>, vector<128x128xf32>
    %cst_47 = arith.constant dense<0.000000e+00> : vector<128x128xf32>
    %56 = tpu.matmul %54, %55, %cst_47 {dimension_numbers = #tpu.dot_dimension_numbers<[1], [0], [0], [1], [0, 0, 1, 1], [], []>} : vector<128x128xf32>, vector<128x128xf32>, vector<128x128xf32> -> vector<128x128xf32>
    %c0_48 = arith.constant 0 : index
    %c0_49 = arith.constant 0 : index
    %57 = vector.load %arg11[%c0_48, %c0_49] : memref<1x128xf32, #tpu.memory_space<vmem>>, vector<1x128xf32>
    %58 = vector.broadcast %57 : vector<1x128xf32> to vector<128x128xf32>
    %59 = arith.addf %56, %58 : vector<128x128xf32>
    %cst_50 = arith.constant 0.000000e+00 : f32
    %60 = vector.broadcast %cst_50 : f32 to vector<128x128xf32>
    %61 = arith.maximumf %59, %60 : vector<128x128xf32>
    %c0_51 = arith.constant 0 : index
    %c0_52 = arith.constant 0 : index
    %62 = vector.load %arg12[%c0_51, %c0_52] : memref<1x128xf32, #tpu.memory_space<vmem>>, vector<1x128xf32>
    %63 = vector.broadcast %62 : vector<1x128xf32> to vector<128x128xf32>
    %64 = arith.mulf %61, %63 : vector<128x128xf32>
    %c0_53 = arith.constant 0 : index
    %c0_54 = arith.constant 0 : index
    %65 = vector.load %arg13[%c0_53, %c0_54] : memref<1x128xf32, #tpu.memory_space<vmem>>, vector<1x128xf32>
    %66 = vector.broadcast %65 : vector<1x128xf32> to vector<128x128xf32>
    %67 = arith.addf %64, %66 : vector<128x128xf32>
    %c1_55 = arith.constant 1 : index
    %c0_56 = arith.constant 0 : index
    %c0_57 = arith.constant 0 : index
    %68 = vector.load %arg3[%c1_55, %c0_56, %c0_57] : memref<2x128x1xf32, #tpu.memory_space<vmem>>, vector<1x128x1xf32>
    %69 = vector.shape_cast %68 : vector<1x128x1xf32> to vector<128x1xf32>
    %cst_58 = arith.constant 5.000000e-01 : f32
    %70 = vector.broadcast %cst_58 : f32 to vector<128x1xf32>
    %71 = arith.cmpf ogt, %69, %70 : vector<128x1xf32>
    %cst_59 = arith.constant -1.000000e+30 : f32
    %72 = vector.shape_cast %71 : vector<128x1xi1> to vector<128x1xi1>
    %73 = vector.broadcast %72 : vector<128x1xi1> to vector<128x128xi1>
    %74 = vector.broadcast %cst_59 : f32 to vector<128x128xf32>
    %75 = arith.select %73, %67, %74 : vector<128x128xi1>, vector<128x128xf32>
    %76 = arith.maximumf %40, %75 : vector<128x128xf32>
    %cst_60 = arith.constant 0.000000e+00 : f32
    %77 = vector.broadcast %cst_60 : f32 to vector<128x128xf32>
    %78 = arith.maximumf %76, %77 : vector<128x128xf32>
    %c0_61 = arith.constant 0 : index
    %c0_62 = arith.constant 0 : index
    %79 = vector.load %arg14[%c0_61, %c0_62] : memref<128x128xf32, #tpu.memory_space<vmem>>, vector<128x128xf32>
    tpu.vector_store %arg14[%c0_61, %c0_62], %78 {strides = array<i32>} : memref<128x128xf32, #tpu.memory_space<vmem>>, vector<128x128xf32>,
    %c0_63 = arith.constant 0 : index
    %c0_64 = arith.constant 0 : index
    %80 = vector.load %arg4[%c0_63, %c0_64] : memref<8x128xf32, #tpu.memory_space<vmem>>, vector<8x128xf32>
    %cst_65 = arith.constant dense<0.000000e+00> : vector<8x128xf32>
    %81 = tpu.matmul %80, %78, %cst_65 {dimension_numbers = #tpu.dot_dimension_numbers<[1], [0], [0], [1], [0, 0, 1, 1], [], []>} : vector<8x128xf32>, vector<128x128xf32>, vector<8x128xf32> -> vector<8x128xf32>
    %c0_66 = arith.constant 0 : index
    %c0_67 = arith.constant 0 : index
    %c0_68 = arith.constant 0 : index
    %82 = vector.load %arg15[%c0_66, %c0_67, %c0_68] : memref<1x8x128xf32, #tpu.memory_space<vmem>>, vector<1x8x128xf32>
    %83 = vector.shape_cast %82 : vector<1x8x128xf32> to vector<8x128xf32>
    %84 = vector.shape_cast %81 : vector<8x128xf32> to vector<1x8x128xf32>
    tpu.vector_store %arg15[%c0_66, %c0_67, %c0_68], %84 {strides = array<i32>} : memref<1x8x128xf32, #tpu.memory_space<vmem>>, vector<1x8x128xf32>,
    return
  }
  func.func @transform_0(%arg0: i32) -> (i32, i32) {
    %c0_i32 = arith.constant 0 : i32
    %c0_i32_0 = arith.constant 0 : i32
    return %arg0, %c0_i32 : i32, i32
  }
  func.func @transform_1(%arg0: i32) -> (i32, i32, i32) {
    %c0_i32 = arith.constant 0 : i32
    %c0_i32_0 = arith.constant 0 : i32
    %c0_i32_1 = arith.constant 0 : i32
    return %c0_i32, %arg0, %c0_i32_0 : i32, i32, i32
  }
  func.func @transform_2(%arg0: i32) -> (i32, i32, i32) {
    %c0_i32 = arith.constant 0 : i32
    %c0_i32_0 = arith.constant 0 : i32
    %c0_i32_1 = arith.constant 0 : i32
    return %c0_i32, %arg0, %c0_i32_0 : i32, i32, i32
  }
  func.func @transform_3(%arg0: i32) -> (i32, i32) {
    %c0_i32 = arith.constant 0 : i32
    %c0_i32_0 = arith.constant 0 : i32
    return %c0_i32, %arg0 : i32, i32
  }
  func.func @transform_4(%arg0: i32) -> (i32, i32) {
    %c0_i32 = arith.constant 0 : i32
    %c0_i32_0 = arith.constant 0 : i32
    %c0_i32_1 = arith.constant 0 : i32
    return %c0_i32, %c0_i32_0 : i32, i32
  }
  func.func @transform_5(%arg0: i32) -> (i32, i32) {
    %c0_i32 = arith.constant 0 : i32
    %c0_i32_0 = arith.constant 0 : i32
    %c0_i32_1 = arith.constant 0 : i32
    return %c0_i32, %c0_i32_0 : i32, i32
  }
  func.func @transform_6(%arg0: i32) -> (i32, i32) {
    %c0_i32 = arith.constant 0 : i32
    %c0_i32_0 = arith.constant 0 : i32
    %c0_i32_1 = arith.constant 0 : i32
    return %c0_i32, %c0_i32_0 : i32, i32
  }
  func.func @transform_7(%arg0: i32) -> (i32, i32) {
    %c0_i32 = arith.constant 0 : i32
    %c0_i32_0 = arith.constant 0 : i32
    %c0_i32_1 = arith.constant 0 : i32
    return %c0_i32, %c0_i32_0 : i32, i32
  }
  func.func @transform_8(%arg0: i32) -> (i32, i32) {
    %c0_i32 = arith.constant 0 : i32
    %c0_i32_0 = arith.constant 0 : i32
    %c0_i32_1 = arith.constant 0 : i32
    return %c0_i32, %c0_i32_0 : i32, i32
  }
  func.func @transform_9(%arg0: i32) -> (i32, i32) {
    %c0_i32 = arith.constant 0 : i32
    %c0_i32_0 = arith.constant 0 : i32
    %c0_i32_1 = arith.constant 0 : i32
    return %c0_i32, %c0_i32_0 : i32, i32
  }
  func.func @transform_10(%arg0: i32) -> (i32, i32) {
    %c0_i32 = arith.constant 0 : i32
    %c0_i32_0 = arith.constant 0 : i32
    %c0_i32_1 = arith.constant 0 : i32
    return %c0_i32, %c0_i32_0 : i32, i32
  }
  func.func @transform_11(%arg0: i32) -> (i32, i32) {
    %c0_i32 = arith.constant 0 : i32
    %c0_i32_0 = arith.constant 0 : i32
    %c0_i32_1 = arith.constant 0 : i32
    return %c0_i32, %c0_i32_0 : i32, i32
  }
  func.func @transform_12(%arg0: i32) -> (i32, i32) {
    %c0_i32 = arith.constant 0 : i32
    %c0_i32_0 = arith.constant 0 : i32
    %c0_i32_1 = arith.constant 0 : i32
    return %c0_i32, %c0_i32_0 : i32, i32
  }
  func.func @transform_13(%arg0: i32) -> (i32, i32) {
    %c0_i32 = arith.constant 0 : i32
    %c0_i32_0 = arith.constant 0 : i32
    return %arg0, %c0_i32 : i32, i32
  }
  func.func @transform_14(%arg0: i32) -> (i32, i32, i32) {
    %c0_i32 = arith.constant 0 : i32
    %c0_i32_0 = arith.constant 0 : i32
    %c0_i32_1 = arith.constant 0 : i32
    return %arg0, %c0_i32, %c0_i32_0 : i32, i32, i32
  }
}

</mosaic_0001>

<llo_original>
// kernel: tpu_custom_call.1
$region0: #{tpu_custom_call.1}
  #allocation0 [shape = 'u32[]', space=smem, size = 0x4, offset = 0x4, fixed_abs, tag = 'smem constant byte address 0x4 - core index']
  #allocation1 [shape = 'u32[72,128]{1,0:T(1,128)}', space=vmem, size = 0x9000, scoped, tag = 'internal scratch']
  %s0 = inlined_call_operand.hbm [shape: f32[128,128], index: 0, kind: input, shape index: {}]
  %s1 = inlined_call_operand.vmem [shape: f32[2,128,128], index: 1, kind: input, shape index: {}]
  %s2 = inlined_call_operand.vmem [shape: f32[2,128,1], index: 2, kind: input, shape index: {}]
  %s3 = inlined_call_operand.hbm [shape: f32[8,128], index: 3, kind: input, shape index: {}]
  %s4 = inlined_call_operand.hbm [shape: f32[128,128], index: 4, kind: input, shape index: {}]
  %s5 = inlined_call_operand.hbm [shape: f32[128,128], index: 5, kind: input, shape index: {}]
  %s6 = inlined_call_operand.vmem [shape: f32[1,128], index: 6, kind: input, shape index: {}]
  %s7 = inlined_call_operand.hbm [shape: f32[128,128], index: 7, kind: input, shape index: {}]
  %s8 = inlined_call_operand.vmem [shape: f32[1,128], index: 8, kind: input, shape index: {}]
  %s9 = inlined_call_operand.hbm [shape: f32[128,128], index: 9, kind: input, shape index: {}]
  %s10 = inlined_call_operand.vmem [shape: f32[1,128], index: 10, kind: input, shape index: {}]
  %s11 = inlined_call_operand.vmem [shape: f32[1,128], index: 11, kind: input, shape index: {}]
  %s12 = inlined_call_operand.vmem [shape: f32[1,128], index: 12, kind: input, shape index: {}]
  %s13 = inlined_call_operand.hbm [shape: f32[128,128], index: 13, kind: output, shape index: {0}]
  %s14 = inlined_call_operand.hbm [shape: f32[1,8,128], index: 14, kind: output, shape index: {1}]
  %15 = xla_tuple %s13, %s14
  %s16 = sld [smem:[#allocation0]]
  $region94: #{tpu_custom_call.1} parent=0
    _
  %s18 = ssub.s32 1, %s16
  %s19 = scalar_select 0, %s18, %s16
  $region1: #{tpu_custom_call.1} parent=0
    #allocation2 [shape = 'u8[65536]{0}', space=vmem, size = 0x10000, scoped, tag = 'input window, operand 0, single buffered']
    #allocation3 [shape = 's32[1]{0}', space=sflag, size = 0x4, scoped, tag = 'scoped memory for tpu_custom_call.1']
    #allocation4 [shape = 's32[1]{0}', space=sflag, size = 0x4, scoped, tag = 'scoped memory for tpu_custom_call.1']
    #allocation5 [shape = 'u8[4096]{0}', space=vmem, size = 0x1000, scoped, tag = 'input window, operand 3, single buffered']
    #allocation6 [shape = 's32[1]{0}', space=sflag, size = 0x4, scoped, tag = 'scoped memory for tpu_custom_call.1']
    #allocation7 [shape = 'u8[65536]{0}', space=vmem, size = 0x10000, scoped, tag = 'input window, operand 4, single buffered']
    #allocation8 [shape = 'u8[65536]{0}', space=vmem, size = 0x10000, scoped, tag = 'input window, operand 5, single buffered']
    #allocation9 [shape = 's32[1]{0}', space=sflag, size = 0x4, scoped, tag = 'scoped memory for tpu_custom_call.1']
    #allocation10 [shape = 'u8[65536]{0}', space=vmem, size = 0x10000, scoped, tag = 'input window, operand 7, single buffered']
    #allocation11 [shape = 'u8[65536]{0}', space=vmem, size = 0x10000, scoped, tag = 'input window, operand 9, single buffered']
    #allocation12 [shape = 's32[1]{0}', space=sflag, size = 0x4, scoped, tag = 'scoped memory for tpu_custom_call.1']
    #allocation13 [shape = 'u8[65536]{0}', space=vmem, size = 0x10000, scoped, tag = 'output window, operand 0, single buffered']
    #allocation14 [shape = 'u8[4096]{0}', space=vmem, size = 0x1000, scoped, tag = 'output window, operand 1, single buffered']
    #allocation15 [shape = 's32[1]{0}', space=sflag, size = 0x4, scoped, tag = 'scoped memory for tpu_custom_call.1']
    %20 = vsyncpa [#allocation3], 0
    %21 = vsyncpa [#allocation6], 0
    %22 = vsyncpa [#allocation9], 0
    %23 = vsyncpa [#allocation12], 0
    %24 = vsyncpa [#allocation4], 0
    %25 = vsyncpa [#allocation15], 0
    // Predicated region
    $region2: #{tpu_custom_call.1} parent=1 // pred_check
      _
    $region3: #{tpu_custom_call.1} parent=1 // pred_check_branch
      %27 = sbr.rel (0) target = $region5
    $region4: #{tpu_custom_call.1} parent=1 // pred_region
      %29 = vsyncadd [#allocation3], 0
      %s30 = sshll.u32 %s0, 4
      %s31 = int_to_ptr.hbm [resolvable:$true] %s30
      %s32 = sshll.u32 [#allocation2], 4
      %s33 = int_to_ptr.vmem [resolvable:$true] %s32
      %38 = dma.hbm_to_vmem [thread:$0]  %s31, 2048, %s33, [#allocation3], 128, 128, 8
    $region5: #{tpu_custom_call.1} parent=1 // pred_fallthru
      _
    // Predicated region
    $region6: #{tpu_custom_call.1} parent=1 // pred_check
      _
    $region7: #{tpu_custom_call.1} parent=1 // pred_check_branch
      %40 = sbr.rel (0) target = $region9
    $region8: #{tpu_custom_call.1} parent=1 // pred_region
      _
    $region9: #{tpu_custom_call.1} parent=1 // pred_fallthru
      _
    // Predicated region
    $region10: #{tpu_custom_call.1} parent=1 // pred_check
      _
    $region11: #{tpu_custom_call.1} parent=1 // pred_check_branch
      %42 = sbr.rel (0) target = $region13
    $region12: #{tpu_custom_call.1} parent=1 // pred_region
      _
    $region13: #{tpu_custom_call.1} parent=1 // pred_fallthru
      _
    // Predicated region
    $region14: #{tpu_custom_call.1} parent=1 // pred_check
      _
    $region15: #{tpu_custom_call.1} parent=1 // pred_check_branch
      %44 = sbr.rel (0) target = $region17
    $region16: #{tpu_custom_call.1} parent=1 // pred_region
      %46 = vsyncadd [#allocation6], 0
      %s48 = sshll.u32 %s3, 4
      %s49 = int_to_ptr.hbm [resolvable:$true] %s48
      %s50 = sshll.u32 [#allocation5], 4
      %s51 = int_to_ptr.vmem [resolvable:$true] %s50
      %53 = dma.hbm_to_vmem [thread:$0]  %s49, 128, %s51, [#allocation6]
    $region17: #{tpu_custom_call.1} parent=1 // pred_fallthru
      _
    // Predicated region
    $region18: #{tpu_custom_call.1} parent=1 // pred_check
      _
    $region19: #{tpu_custom_call.1} parent=1 // pred_check_branch
      %55 = sbr.rel (0) target = $region21
    $region20: #{tpu_custom_call.1} parent=1 // pred_region
      %57 = vsyncadd [#allocation6], 0
      %s58 = sshll.u32 %s4, 4
      %s59 = int_to_ptr.hbm [resolvable:$true] %s58
      %s60 = sshll.u32 [#allocation7], 4
      %s61 = int_to_ptr.vmem [resolvable:$true] %s60
      %66 = dma.hbm_to_vmem [thread:$0]  %s59, 2048, %s61, [#allocation6], 128, 128, 8
    $region21: #{tpu_custom_call.1} parent=1 // pred_fallthru
      _
    // Predicated region
    $region22: #{tpu_custom_call.1} parent=1 // pred_check
      _
    $region23: #{tpu_custom_call.1} parent=1 // pred_check_branch
      %68 = sbr.rel (0) target = $region25
    $region24: #{tpu_custom_call.1} parent=1 // pred_region
      %70 = vsyncadd [#allocation9], 0
      %s71 = sshll.u32 %s5, 4
      %s72 = int_to_ptr.hbm [resolvable:$true] %s71
      %s73 = sshll.u32 [#allocation8], 4
      %s74 = int_to_ptr.vmem [resolvable:$true] %s73
      %79 = dma.hbm_to_vmem [thread:$0]  %s72, 2048, %s74, [#allocation9], 128, 128, 8
    $region25: #{tpu_custom_call.1} parent=1 // pred_fallthru
      _
    // Predicated region
    $region26: #{tpu_custom_call.1} parent=1 // pred_check
      _
    $region27: #{tpu_custom_call.1} parent=1 // pred_check_branch
      %81 = sbr.rel (0) target = $region29
    $region28: #{tpu_custom_call.1} parent=1 // pred_region
      _
    $region29: #{tpu_custom_call.1} parent=1 // pred_fallthru
      _
    // Predicated region
    $region30: #{tpu_custom_call.1} parent=1 // pred_check
      _
    $region31: #{tpu_custom_call.1} parent=1 // pred_check_branch
      %83 = sbr.rel (0) target = $region33
    $region32: #{tpu_custom_call.1} parent=1 // pred_region
      %85 = vsyncadd [#allocation9], 0
      %s86 = sshll.u32 %s7, 4
      %s87 = int_to_ptr.hbm [resolvable:$true] %s86
      %s88 = sshll.u32 [#allocation10], 4
      %s89 = int_to_ptr.vmem [resolvable:$true] %s88
      %94 = dma.hbm_to_vmem [thread:$0]  %s87, 2048, %s89, [#allocation9], 128, 128, 8
    $region33: #{tpu_custom_call.1} parent=1 // pred_fallthru
      _
    // Predicated region
    $region34: #{tpu_custom_call.1} parent=1 // pred_check
      _
    $region35: #{tpu_custom_call.1} parent=1 // pred_check_branch
      %96 = sbr.rel (0) target = $region37
    $region36: #{tpu_custom_call.1} parent=1 // pred_region
      _
    $region37: #{tpu_custom_call.1} parent=1 // pred_fallthru
      _
    // Predicated region
    $region38: #{tpu_custom_call.1} parent=1 // pred_check
      _
    $region39: #{tpu_custom_call.1} parent=1 // pred_check_branch
      %98 = sbr.rel (0) target = $region41
    $region40: #{tpu_custom_call.1} parent=1 // pred_region
      %100 = vsyncadd [#allocation12], 0
      %s101 = sshll.u32 %s9, 4
      %s102 = int_to_ptr.hbm [resolvable:$true] %s101
      %s103 = sshll.u32 [#allocation11], 4
      %s104 = int_to_ptr.vmem [resolvable:$true] %s103
      %109 = dma.hbm_to_vmem [thread:$0]  %s102, 2048, %s104, [#allocation12], 128, 128, 8
    $region41: #{tpu_custom_call.1} parent=1 // pred_fallthru
      _
    // Predicated region
    $region42: #{tpu_custom_call.1} parent=1 // pred_check
      _
    $region43: #{tpu_custom_call.1} parent=1 // pred_check_branch
      %111 = sbr.rel (0) target = $region45
    $region44: #{tpu_custom_call.1} parent=1 // pred_region
      _
    $region45: #{tpu_custom_call.1} parent=1 // pred_fallthru
      _
    // Predicated region
    $region46: #{tpu_custom_call.1} parent=1 // pred_check
      _
    $region47: #{tpu_custom_call.1} parent=1 // pred_check_branch
      %113 = sbr.rel (0) target = $region49
    $region48: #{tpu_custom_call.1} parent=1 // pred_region
      _
    $region49: #{tpu_custom_call.1} parent=1 // pred_fallthru
      _
    // Predicated region
    $region50: #{tpu_custom_call.1} parent=1 // pred_check
      _
    $region51: #{tpu_custom_call.1} parent=1 // pred_check_branch
      %115 = sbr.rel (0) target = $region53
    $region52: #{tpu_custom_call.1} parent=1 // pred_region
      _
    $region53: #{tpu_custom_call.1} parent=1 // pred_fallthru
      _
    // Predicated region
    $region54: #{tpu_custom_call.1} parent=1 // pred_check
      _
    $region55: #{tpu_custom_call.1} parent=1 // pred_check_branch
      %117 = sbr.rel (0) target = $region57
    $region56: #{tpu_custom_call.1} parent=1 // pred_region
      %119 = dma.done [#allocation3], 2048
    $region57: #{tpu_custom_call.1} parent=1 // pred_fallthru
      _
    // Predicated region
    $region58: #{tpu_custom_call.1} parent=1 // pred_check
      _
    $region59: #{tpu_custom_call.1} parent=1 // pred_check_branch
      %121 = sbr.rel (0) target = $region61
    $region60: #{tpu_custom_call.1} parent=1 // pred_region
      %123 = dma.done [#allocation6], 128
    $region61: #{tpu_custom_call.1} parent=1 // pred_fallthru
      _
    // Predicated region
    $region62: #{tpu_custom_call.1} parent=1 // pred_check
      _
    $region63: #{tpu_custom_call.1} parent=1 // pred_check_branch
      %125 = sbr.rel (0) target = $region65
    $region64: #{tpu_custom_call.1} parent=1 // pred_region
      %127 = dma.done [#allocation6], 2048
    $region65: #{tpu_custom_call.1} parent=1 // pred_fallthru
      _
    // Predicated region
    $region66: #{tpu_custom_call.1} parent=1 // pred_check
      _
    $region67: #{tpu_custom_call.1} parent=1 // pred_check_branch
      %129 = sbr.rel (0) target = $region69
    $region68: #{tpu_custom_call.1} parent=1 // pred_region
      %131 = dma.done [#allocation9], 2048
    $region69: #{tpu_custom_call.1} parent=1 // pred_fallthru
      _
    // Predicated region
    $region70: #{tpu_custom_call.1} parent=1 // pred_check
      _
    $region71: #{tpu_custom_call.1} parent=1 // pred_check_branch
      %133 = sbr.rel (0) target = $region73
    $region72: #{tpu_custom_call.1} parent=1 // pred_region
      %135 = dma.done [#allocation9], 2048
    $region73: #{tpu_custom_call.1} parent=1 // pred_fallthru
      _
    // Predicated region
    $region74: #{tpu_custom_call.1} parent=1 // pred_check
      _
    $region75: #{tpu_custom_call.1} parent=1 // pred_check_branch
      %137 = sbr.rel (0) target = $region77
    $region76: #{tpu_custom_call.1} parent=1 // pred_region
      %139 = dma.done [#allocation12], 2048
    $region77: #{tpu_custom_call.1} parent=1 // pred_fallthru
      _
    %v140 = vld [vmem:[#allocation2] sm:$0xff]
    %v141 = vld [vmem:[#allocation2 + $0x8] sm:$0xff]
    %v142 = vld [vmem:[#allocation2 + $0x10] sm:$0xff]
    %v143 = vld [vmem:[#allocation2 + $0x18] sm:$0xff]
    %v144 = vld [vmem:[#allocation2 + $0x20] sm:$0xff]
    %v145 = vld [vmem:[#allocation2 + $0x28] sm:$0xff]
    %v146 = vld [vmem:[#allocation2 + $0x30] sm:$0xff]
    %v147 = vld [vmem:[#allocation2 + $0x38] sm:$0xff]
    %v148 = vld [vmem:[#allocation2 + $0x40] sm:$0xff]
    %v149 = vld [vmem:[#allocation2 + $0x48] sm:$0xff]
    %v150 = vld [vmem:[#allocation2 + $0x50] sm:$0xff]
    %v151 = vld [vmem:[#allocation2 + $0x58] sm:$0xff]
    %v152 = vld [vmem:[#allocation2 + $0x60] sm:$0xff]
    %v153 = vld [vmem:[#allocation2 + $0x68] sm:$0xff]
    %v154 = vld [vmem:[#allocation2 + $0x70] sm:$0xff]
    %v155 = vld [vmem:[#allocation2 + $0x78] sm:$0xff]
    %v156 = vld [vmem:[#allocation8] sm:$0xff]
    %v157 = vld [vmem:[#allocation8 + $0x8] sm:$0xff]
    %v158 = vld [vmem:[#allocation8 + $0x10] sm:$0xff]
    %v159 = vld [vmem:[#allocation8 + $0x18] sm:$0xff]
    %v160 = vld [vmem:[#allocation8 + $0x20] sm:$0xff]
    %v161 = vld [vmem:[#allocation8 + $0x28] sm:$0xff]
    %v162 = vld [vmem:[#allocation8 + $0x30] sm:$0xff]
    %v163 = vld [vmem:[#allocation8 + $0x38] sm:$0xff]
    %v164 = vld [vmem:[#allocation8 + $0x40] sm:$0xff]
    %v165 = vld [vmem:[#allocation8 + $0x48] sm:$0xff]
    %v166 = vld [vmem:[#allocation8 + $0x50] sm:$0xff]
    %v167 = vld [vmem:[#allocation8 + $0x58] sm:$0xff]
    %v168 = vld [vmem:[#allocation8 + $0x60] sm:$0xff]
    %v169 = vld [vmem:[#allocation8 + $0x68] sm:$0xff]
    %v170 = vld [vmem:[#allocation8 + $0x70] sm:$0xff]
    %v171 = vld [vmem:[#allocation8 + $0x78] sm:$0xff]
    %v172 = vld [vmem:[%s6] sm:$0x1]
    %v174 = vperm.slane %v172, 0
    %176 = vmatpush.msra.mxu0 %v171
    %177 = vmatpush.msra.mxu0 %v170
    %178 = vmatpush.msra.mxu0 %v169
    %179 = vmatpush.msra.mxu0 %v168
    %180 = vmatpush.msra.mxu0 %v167
    %181 = vmatpush.msra.mxu0 %v166
    %182 = vmatpush.msra.mxu0 %v165
    %183 = vmatpush.msra.mxu0 %v164
    %184 = vmatpush.msra.mxu0 %v163
    %185 = vmatpush.msra.mxu0 %v162
    %186 = vmatpush.msra.mxu0 %v161
    %187 = vmatpush.msra.mxu0 %v160
    %188 = vmatpush.msra.mxu0 %v159
    %189 = vmatpush.msra.mxu0 %v158
    %190 = vmatpush.msra.mxu0 %v157
    %191 = vmatpush.msra.mxu0 %v156
    %192 = vmatmul.f32.gmra.mxu0 %v140
    %v193 = vpop.f32.mrf.mxu0
    %v194 = vadd.f32 %v174, %v193
    %195 = vmatmul.f32.gmra.mxu0 %v141
    %v196 = vpop.f32.mrf.mxu0
    %v197 = vadd.f32 %v174, %v196
    %198 = vmatmul.f32.gmra.mxu0 %v142
    %v199 = vpop.f32.mrf.mxu0
    %v200 = vadd.f32 %v174, %v199
    %201 = vmatmul.f32.gmra.mxu0 %v143
    %v202 = vpop.f32.mrf.mxu0
    %v203 = vadd.f32 %v174, %v202
    %204 = vmatmul.f32.gmra.mxu0 %v144
    %v205 = vpop.f32.mrf.mxu0
    %v206 = vadd.f32 %v174, %v205
    %207 = vmatmul.f32.gmra.mxu0 %v145
    %v208 = vpop.f32.mrf.mxu0
    %v209 = vadd.f32 %v174, %v208
    %210 = vmatmul.f32.gmra.mxu0 %v146
    %v211 = vpop.f32.mrf.mxu0
    %v212 = vadd.f32 %v174, %v211
    %213 = vmatmul.f32.gmra.mxu0 %v147
    %v214 = vpop.f32.mrf.mxu0
    %v215 = vadd.f32 %v174, %v214
    %216 = vmatmul.f32.gmra.mxu0 %v148
    %v217 = vpop.f32.mrf.mxu0
    %v218 = vadd.f32 %v174, %v217
    %219 = vmatmul.f32.gmra.mxu0 %v149
    %v220 = vpop.f32.mrf.mxu0
    %v221 = vadd.f32 %v174, %v220
    %222 = vmatmul.f32.gmra.mxu0 %v150
    %v223 = vpop.f32.mrf.mxu0
    %v224 = vadd.f32 %v174, %v223
    %225 = vmatmul.f32.gmra.mxu0 %v151
    %v226 = vpop.f32.mrf.mxu0
    %v227 = vadd.f32 %v174, %v226
    %228 = vmatmul.f32.gmra.mxu0 %v152
    %v229 = vpop.f32.mrf.mxu0
    %v230 = vadd.f32 %v174, %v229
    %231 = vmatmul.f32.gmra.mxu0 %v153
    %v232 = vpop.f32.mrf.mxu0
    %v233 = vadd.f32 %v174, %v232
    %234 = vmatmul.f32.gmra.mxu0 %v154
    %v235 = vpop.f32.mrf.mxu0
    %v236 = vadd.f32 %v174, %v235
    %237 = vmatmul.f32.gmra.mxu0 %v155
    %v238 = vpop.f32.mrf.mxu0
    %v239 = vadd.f32 %v174, %v238
    %240 = vdwg.mxu0
    %v241 = vld [vmem:[%s1] sm:$0xff]
    %v242 = vld [vmem:[%s1 + $0x8] sm:$0xff]
    %v243 = vld [vmem:[%s1 + $0x10] sm:$0xff]
    %v244 = vld [vmem:[%s1 + $0x18] sm:$0xff]
    %v245 = vld [vmem:[%s1 + $0x20] sm:$0xff]
    %v246 = vld [vmem:[%s1 + $0x28] sm:$0xff]
    %v247 = vld [vmem:[%s1 + $0x30] sm:$0xff]
    %v248 = vld [vmem:[%s1 + $0x38] sm:$0xff]
    %v249 = vld [vmem:[%s1 + $0x40] sm:$0xff]
    %v250 = vld [vmem:[%s1 + $0x48] sm:$0xff]
    %v251 = vld [vmem:[%s1 + $0x50] sm:$0xff]
    %v252 = vld [vmem:[%s1 + $0x58] sm:$0xff]
    %v253 = vld [vmem:[%s1 + $0x60] sm:$0xff]
    %v254 = vld [vmem:[%s1 + $0x68] sm:$0xff]
    %v255 = vld [vmem:[%s1 + $0x70] sm:$0xff]
    %v256 = vld [vmem:[%s1 + $0x78] sm:$0xff]
    %v257 = vld [vmem:[#allocation7] sm:$0xff]
    %v258 = vld [vmem:[#allocation7 + $0x8] sm:$0xff]
    %v259 = vld [vmem:[#allocation7 + $0x10] sm:$0xff]
    %v260 = vld [vmem:[#allocation7 + $0x18] sm:$0xff]
    %v261 = vld [vmem:[#allocation7 + $0x20] sm:$0xff]
    %v262 = vld [vmem:[#allocation7 + $0x28] sm:$0xff]
    %v263 = vld [vmem:[#allocation7 + $0x30] sm:$0xff]
    %v264 = vld [vmem:[#allocation7 + $0x38] sm:$0xff]
    %v265 = vld [vmem:[#allocation7 + $0x40] sm:$0xff]
    %v266 = vld [vmem:[#allocation7 + $0x48] sm:$0xff]
    %v267 = vld [vmem:[#allocation7 + $0x50] sm:$0xff]
    %v268 = vld [vmem:[#allocation7 + $0x58] sm:$0xff]
    %v269 = vld [vmem:[#allocation7 + $0x60] sm:$0xff]
    %v270 = vld [vmem:[#allocation7 + $0x68] sm:$0xff]
    %v271 = vld [vmem:[#allocation7 + $0x70] sm:$0xff]
    %v272 = vld [vmem:[#allocation7 + $0x78] sm:$0xff]
    %273 = vmatpush.msra.mxu0 %v272
    %274 = vmatpush.msra.mxu0 %v271
    %275 = vmatpush.msra.mxu0 %v270
    %276 = vmatpush.msra.mxu0 %v269
    %277 = vmatpush.msra.mxu0 %v268
    %278 = vmatpush.msra.mxu0 %v267
    %279 = vmatpush.msra.mxu0 %v266
    %280 = vmatpush.msra.mxu0 %v265
    %281 = vmatpush.msra.mxu0 %v264
    %282 = vmatpush.msra.mxu0 %v263
    %283 = vmatpush.msra.mxu0 %v262
    %284 = vmatpush.msra.mxu0 %v261
    %285 = vmatpush.msra.mxu0 %v260
    %286 = vmatpush.msra.mxu0 %v259
    %287 = vmatpush.msra.mxu0 %v258
    %288 = vmatpush.msra.mxu0 %v257
    %289 = vmatmul.f32.gmra.mxu0 %v241
    %v290 = vpop.f32.mrf.mxu0
    %v291 = vadd.f32 %v194, %v290
    %292 = vmatmul.f32.gmra.mxu0 %v242
    %v293 = vpop.f32.mrf.mxu0
    %v294 = vadd.f32 %v197, %v293
    %295 = vmatmul.f32.gmra.mxu0 %v243
    %v296 = vpop.f32.mrf.mxu0
    %v297 = vadd.f32 %v200, %v296
    %298 = vmatmul.f32.gmra.mxu0 %v244
    %v299 = vpop.f32.mrf.mxu0
    %v300 = vadd.f32 %v203, %v299
    %301 = vmatmul.f32.gmra.mxu0 %v245
    %v302 = vpop.f32.mrf.mxu0
    %v303 = vadd.f32 %v206, %v302
    %304 = vmatmul.f32.gmra.mxu0 %v246
    %v305 = vpop.f32.mrf.mxu0
    %v306 = vadd.f32 %v209, %v305
    %307 = vmatmul.f32.gmra.mxu0 %v247
    %v308 = vpop.f32.mrf.mxu0
    %v309 = vadd.f32 %v212, %v308
    %310 = vmatmul.f32.gmra.mxu0 %v248
    %v311 = vpop.f32.mrf.mxu0
    %v312 = vadd.f32 %v215, %v311
    %313 = vmatmul.f32.gmra.mxu0 %v249
    %v314 = vpop.f32.mrf.mxu0
    %v315 = vadd.f32 %v218, %v314
    %316 = vmatmul.f32.gmra.mxu0 %v250
    %v317 = vpop.f32.mrf.mxu0
    %v318 = vadd.f32 %v221, %v317
    %319 = vmatmul.f32.gmra.mxu0 %v251
    %v320 = vpop.f32.mrf.mxu0
    %v321 = vadd.f32 %v224, %v320
    %322 = vmatmul.f32.gmra.mxu0 %v252
    %v323 = vpop.f32.mrf.mxu0
    %v324 = vadd.f32 %v227, %v323
    %325 = vmatmul.f32.gmra.mxu0 %v253
    %v326 = vpop.f32.mrf.mxu0
    %v327 = vadd.f32 %v230, %v326
    %328 = vmatmul.f32.gmra.mxu0 %v254
    %v329 = vpop.f32.mrf.mxu0
    %v330 = vadd.f32 %v233, %v329
    %331 = vmatmul.f32.gmra.mxu0 %v255
    %v332 = vpop.f32.mrf.mxu0
    %v333 = vadd.f32 %v236, %v332
    %334 = vmatmul.f32.gmra.mxu0 %v256
    %v335 = vpop.f32.mrf.mxu0
    %v336 = vadd.f32 %v239, %v335
    %337 = vdwg.mxu0
    %v338 = vmax.f32 %v291, 0.0
    %v339 = vmax.f32 %v294, 0.0
    %v340 = vmax.f32 %v297, 0.0
    %v341 = vmax.f32 %v300, 0.0
    %v342 = vmax.f32 %v303, 0.0
    %v343 = vmax.f32 %v306, 0.0
    %v344 = vmax.f32 %v309, 0.0
    %v345 = vmax.f32 %v312, 0.0
    %v346 = vmax.f32 %v315, 0.0
    %v347 = vmax.f32 %v318, 0.0
    %v348 = vmax.f32 %v321, 0.0
    %v349 = vmax.f32 %v324, 0.0
    %v350 = vmax.f32 %v327, 0.0
    %v351 = vmax.f32 %v330, 0.0
    %v352 = vmax.f32 %v333, 0.0
    %v353 = vmax.f32 %v336, 0.0
    %v354 = vld [vmem:[#allocation10] sm:$0xff]
    %v355 = vld [vmem:[#allocation10 + $0x8] sm:$0xff]
    %v356 = vld [vmem:[#allocation10 + $0x10] sm:$0xff]
    %v357 = vld [vmem:[#allocation10 + $0x18] sm:$0xff]
    %v358 = vld [vmem:[#allocation10 + $0x20] sm:$0xff]
    %v359 = vld [vmem:[#allocation10 + $0x28] sm:$0xff]
    %v360 = vld [vmem:[#allocation10 + $0x30] sm:$0xff]
    %v361 = vld [vmem:[#allocation10 + $0x38] sm:$0xff]
    %v362 = vld [vmem:[#allocation10 + $0x40] sm:$0xff]
    %v363 = vld [vmem:[#allocation10 + $0x48] sm:$0xff]
    %v364 = vld [vmem:[#allocation10 + $0x50] sm:$0xff]
    %v365 = vld [vmem:[#allocation10 + $0x58] sm:$0xff]
    %v366 = vld [vmem:[#allocation10 + $0x60] sm:$0xff]
    %v367 = vld [vmem:[#allocation10 + $0x68] sm:$0xff]
    %v368 = vld [vmem:[#allocation10 + $0x70] sm:$0xff]
    %v369 = vld [vmem:[#allocation10 + $0x78] sm:$0xff]
    %v370 = vld [vmem:[%s8] sm:$0x1]
    %v372 = vperm.slane %v370, 0
    %374 = vmatpush.msra.mxu0 %v369
    %375 = vmatpush.msra.mxu0 %v368
    %376 = vmatpush.msra.mxu0 %v367
    %377 = vmatpush.msra.mxu0 %v366
    %378 = vmatpush.msra.mxu0 %v365
    %379 = vmatpush.msra.mxu0 %v364
    %380 = vmatpush.msra.mxu0 %v363
    %381 = vmatpush.msra.mxu0 %v362
    %382 = vmatpush.msra.mxu0 %v361
    %383 = vmatpush.msra.mxu0 %v360
    %384 = vmatpush.msra.mxu0 %v359
    %385 = vmatpush.msra.mxu0 %v358
    %386 = vmatpush.msra.mxu0 %v357
    %387 = vmatpush.msra.mxu0 %v356
    %388 = vmatpush.msra.mxu0 %v355
    %389 = vmatpush.msra.mxu0 %v354
    %390 = vmatmul.f32.gmra.mxu0 %v338
    %v391 = vpop.f32.mrf.mxu0
    %v392 = vadd.f32 %v372, %v391
    %393 = vmatmul.f32.gmra.mxu0 %v339
    %v394 = vpop.f32.mrf.mxu0
    %v395 = vadd.f32 %v372, %v394
    %396 = vmatmul.f32.gmra.mxu0 %v340
    %v397 = vpop.f32.mrf.mxu0
    %v398 = vadd.f32 %v372, %v397
    %399 = vmatmul.f32.gmra.mxu0 %v341
    %v400 = vpop.f32.mrf.mxu0
    %v401 = vadd.f32 %v372, %v400
    %402 = vmatmul.f32.gmra.mxu0 %v342
    %v403 = vpop.f32.mrf.mxu0
    %v404 = vadd.f32 %v372, %v403
    %405 = vmatmul.f32.gmra.mxu0 %v343
    %v406 = vpop.f32.mrf.mxu0
    %v407 = vadd.f32 %v372, %v406
    %408 = vmatmul.f32.gmra.mxu0 %v344
    %v409 = vpop.f32.mrf.mxu0
    %v410 = vadd.f32 %v372, %v409
    %411 = vmatmul.f32.gmra.mxu0 %v345
    %v412 = vpop.f32.mrf.mxu0
    %v413 = vadd.f32 %v372, %v412
    %414 = vmatmul.f32.gmra.mxu0 %v346
    %v415 = vpop.f32.mrf.mxu0
    %v416 = vadd.f32 %v372, %v415
    %417 = vmatmul.f32.gmra.mxu0 %v347
    %v418 = vpop.f32.mrf.mxu0
    %v419 = vadd.f32 %v372, %v418
    %420 = vmatmul.f32.gmra.mxu0 %v348
    %v421 = vpop.f32.mrf.mxu0
    %v422 = vadd.f32 %v372, %v421
    %423 = vmatmul.f32.gmra.mxu0 %v349
    %v424 = vpop.f32.mrf.mxu0
    %v425 = vadd.f32 %v372, %v424
    %426 = vmatmul.f32.gmra.mxu0 %v350
    %v427 = vpop.f32.mrf.mxu0
    %v428 = vadd.f32 %v372, %v427
    %429 = vmatmul.f32.gmra.mxu0 %v351
    %v430 = vpop.f32.mrf.mxu0
    %v431 = vadd.f32 %v372, %v430
    %432 = vmatmul.f32.gmra.mxu0 %v352
    %v433 = vpop.f32.mrf.mxu0
    %v434 = vadd.f32 %v372, %v433
    %435 = vmatmul.f32.gmra.mxu0 %v353
    %v436 = vpop.f32.mrf.mxu0
    %v437 = vadd.f32 %v372, %v436
    %438 = vdwg.mxu0
    %v439 = vmax.f32 %v392, 0.0
    %v440 = vmax.f32 %v395, 0.0
    %v441 = vmax.f32 %v398, 0.0
    %v442 = vmax.f32 %v401, 0.0
    %v443 = vmax.f32 %v404, 0.0
    %v444 = vmax.f32 %v407, 0.0
    %v445 = vmax.f32 %v410, 0.0
    %v446 = vmax.f32 %v413, 0.0
    %v447 = vmax.f32 %v416, 0.0
    %v448 = vmax.f32 %v419, 0.0
    %v449 = vmax.f32 %v422, 0.0
    %v450 = vmax.f32 %v425, 0.0
    %v451 = vmax.f32 %v428, 0.0
    %v452 = vmax.f32 %v431, 0.0
    %v453 = vmax.f32 %v434, 0.0
    %v454 = vmax.f32 %v437, 0.0
    %v455 = vld [vmem:[#allocation11] sm:$0xff]
    %v456 = vld [vmem:[#allocation11 + $0x8] sm:$0xff]
    %v457 = vld [vmem:[#allocation11 + $0x10] sm:$0xff]
    %v458 = vld [vmem:[#allocation11 + $0x18] sm:$0xff]
    %v459 = vld [vmem:[#allocation11 + $0x20] sm:$0xff]
    %v460 = vld [vmem:[#allocation11 + $0x28] sm:$0xff]
    %v461 = vld [vmem:[#allocation11 + $0x30] sm:$0xff]
    %v462 = vld [vmem:[#allocation11 + $0x38] sm:$0xff]
    %v463 = vld [vmem:[#allocation11 + $0x40] sm:$0xff]
    %v464 = vld [vmem:[#allocation11 + $0x48] sm:$0xff]
    %v465 = vld [vmem:[#allocation11 + $0x50] sm:$0xff]
    %v466 = vld [vmem:[#allocation11 + $0x58] sm:$0xff]
    %v467 = vld [vmem:[#allocation11 + $0x60] sm:$0xff]
    %v468 = vld [vmem:[#allocation11 + $0x68] sm:$0xff]
    %v469 = vld [vmem:[#allocation11 + $0x70] sm:$0xff]
    %v470 = vld [vmem:[#allocation11 + $0x78] sm:$0xff]
    %v471 = vld [vmem:[%s10] sm:$0x1]
    %v473 = vperm.slane %v471, 0
    %475 = vmatpush.msra.mxu0 %v470
    %476 = vmatpush.msra.mxu0 %v469
    %477 = vmatpush.msra.mxu0 %v468
    %478 = vmatpush.msra.mxu0 %v467
    %479 = vmatpush.msra.mxu0 %v466
    %480 = vmatpush.msra.mxu0 %v465
    %481 = vmatpush.msra.mxu0 %v464
    %482 = vmatpush.msra.mxu0 %v463
    %483 = vmatpush.msra.mxu0 %v462
    %484 = vmatpush.msra.mxu0 %v461
    %485 = vmatpush.msra.mxu0 %v460
    %486 = vmatpush.msra.mxu0 %v459
    %487 = vmatpush.msra.mxu0 %v458
    %488 = vmatpush.msra.mxu0 %v457
    %489 = vmatpush.msra.mxu0 %v456
    %490 = vmatpush.msra.mxu0 %v455
    %491 = vmatmul.f32.gmra.mxu0 %v439
    %v492 = vpop.f32.mrf.mxu0
    %v493 = vadd.f32 %v473, %v492
    %494 = vmatmul.f32.gmra.mxu0 %v440
    %v495 = vpop.f32.mrf.mxu0
    %v496 = vadd.f32 %v473, %v495
    %497 = vmatmul.f32.gmra.mxu0 %v441
    %v498 = vpop.f32.mrf.mxu0
    %v499 = vadd.f32 %v473, %v498
    %500 = vmatmul.f32.gmra.mxu0 %v442
    %v501 = vpop.f32.mrf.mxu0
    %v502 = vadd.f32 %v473, %v501
    %503 = vmatmul.f32.gmra.mxu0 %v443
    %v504 = vpop.f32.mrf.mxu0
    %v505 = vadd.f32 %v473, %v504
    %506 = vmatmul.f32.gmra.mxu0 %v444
    %v507 = vpop.f32.mrf.mxu0
    %v508 = vadd.f32 %v473, %v507
    %509 = vmatmul.f32.gmra.mxu0 %v445
    %v510 = vpop.f32.mrf.mxu0
    %v511 = vadd.f32 %v473, %v510
    %512 = vmatmul.f32.gmra.mxu0 %v446
    %v513 = vpop.f32.mrf.mxu0
    %v514 = vadd.f32 %v473, %v513
    %515 = vmatmul.f32.gmra.mxu0 %v447
    %v516 = vpop.f32.mrf.mxu0
    %v517 = vadd.f32 %v473, %v516
    %518 = vmatmul.f32.gmra.mxu0 %v448
    %v519 = vpop.f32.mrf.mxu0
    %v520 = vadd.f32 %v473, %v519
    %521 = vmatmul.f32.gmra.mxu0 %v449
    %v522 = vpop.f32.mrf.mxu0
    %v523 = vadd.f32 %v473, %v522
    %524 = vmatmul.f32.gmra.mxu0 %v450
    %v525 = vpop.f32.mrf.mxu0
    %v526 = vadd.f32 %v473, %v525
    %527 = vmatmul.f32.gmra.mxu0 %v451
    %v528 = vpop.f32.mrf.mxu0
    %v529 = vadd.f32 %v473, %v528
    %530 = vmatmul.f32.gmra.mxu0 %v452
    %v531 = vpop.f32.mrf.mxu0
    %v532 = vadd.f32 %v473, %v531
    %533 = vmatmul.f32.gmra.mxu0 %v453
    %v534 = vpop.f32.mrf.mxu0
    %v535 = vadd.f32 %v473, %v534
    %536 = vmatmul.f32.gmra.mxu0 %v454
    %v537 = vpop.f32.mrf.mxu0
    %v538 = vadd.f32 %v473, %v537
    %539 = vdwg.mxu0
    %v540 = vmax.f32 %v493, 0.0
    %v541 = vmax.f32 %v496, 0.0
    %v542 = vmax.f32 %v499, 0.0
    %v543 = vmax.f32 %v502, 0.0
    %v544 = vmax.f32 %v505, 0.0
    %v545 = vmax.f32 %v508, 0.0
    %v546 = vmax.f32 %v511, 0.0
    %v547 = vmax.f32 %v514, 0.0
    %v548 = vmax.f32 %v517, 0.0
    %v549 = vmax.f32 %v520, 0.0
    %v550 = vmax.f32 %v523, 0.0
    %v551 = vmax.f32 %v526, 0.0
    %v552 = vmax.f32 %v529, 0.0
    %v553 = vmax.f32 %v532, 0.0
    %v554 = vmax.f32 %v535, 0.0
    %v555 = vmax.f32 %v538, 0.0
    %v556 = vld [vmem:[%s11] sm:$0x1]
    %v558 = vperm.slane %v556, 0
    %v560 = vmul.f32 %v540, %v558
    %v561 = vmul.f32 %v541, %v558
    %v562 = vmul.f32 %v542, %v558
    %v563 = vmul.f32 %v543, %v558
    %v564 = vmul.f32 %v544, %v558
    %v565 = vmul.f32 %v545, %v558
    %v566 = vmul.f32 %v546, %v558
    %v567 = vmul.f32 %v547, %v558
    %v568 = vmul.f32 %v548, %v558
    %v569 = vmul.f32 %v549, %v558
    %v570 = vmul.f32 %v550, %v558
    %v571 = vmul.f32 %v551, %v558
    %v572 = vmul.f32 %v552, %v558
    %v573 = vmul.f32 %v553, %v558
    %v574 = vmul.f32 %v554, %v558
    %v575 = vmul.f32 %v555, %v558
    %v576 = vld [vmem:[%s12] sm:$0x1]
    %v578 = vperm.slane %v576, 0
    %v580 = vadd.f32 %v560, %v578
    %v581 = vadd.f32 %v561, %v578
    %v582 = vadd.f32 %v562, %v578
    %v583 = vadd.f32 %v563, %v578
    %v584 = vadd.f32 %v564, %v578
    %v585 = vadd.f32 %v565, %v578
    %v586 = vadd.f32 %v566, %v578
    %v587 = vadd.f32 %v567, %v578
    %v588 = vadd.f32 %v568, %v578
    %v589 = vadd.f32 %v569, %v578
    %v590 = vadd.f32 %v570, %v578
    %v591 = vadd.f32 %v571, %v578
    %v592 = vadd.f32 %v572, %v578
    %v593 = vadd.f32 %v573, %v578
    %v594 = vadd.f32 %v574, %v578
    %v595 = vadd.f32 %v575, %v578
    %v596 = vld [vmem:[%s2] sm:$0xff]
    %v597 = vld [vmem:[%s2 + $0x8] sm:$0xff]
    %v598 = vld [vmem:[%s2 + $0x10] sm:$0xff]
    %v599 = vld [vmem:[%s2 + $0x18] sm:$0xff]
    %v600 = vld [vmem:[%s2 + $0x20] sm:$0xff]
    %v601 = vld [vmem:[%s2 + $0x28] sm:$0xff]
    %v602 = vld [vmem:[%s2 + $0x30] sm:$0xff]
    %v603 = vld [vmem:[%s2 + $0x38] sm:$0xff]
    %v604 = vld [vmem:[%s2 + $0x40] sm:$0xff]
    %v605 = vld [vmem:[%s2 + $0x48] sm:$0xff]
    %v606 = vld [vmem:[%s2 + $0x50] sm:$0xff]
    %v607 = vld [vmem:[%s2 + $0x58] sm:$0xff]
    %v608 = vld [vmem:[%s2 + $0x60] sm:$0xff]
    %v609 = vld [vmem:[%s2 + $0x68] sm:$0xff]
    %v610 = vld [vmem:[%s2 + $0x70] sm:$0xff]
    %v611 = vld [vmem:[%s2 + $0x78] sm:$0xff]
    %vm612 = vcmp.gt.f32.partialorder %v596, 0.5
    %vm613 = vcmp.gt.f32.partialorder %v597, 0.5
    %vm614 = vcmp.gt.f32.partialorder %v598, 0.5
    %vm615 = vcmp.gt.f32.partialorder %v599, 0.5
    %vm616 = vcmp.gt.f32.partialorder %v600, 0.5
    %vm617 = vcmp.gt.f32.partialorder %v601, 0.5
    %vm618 = vcmp.gt.f32.partialorder %v602, 0.5
    %vm619 = vcmp.gt.f32.partialorder %v603, 0.5
    %vm620 = vcmp.gt.f32.partialorder %v604, 0.5
    %vm621 = vcmp.gt.f32.partialorder %v605, 0.5
    %vm622 = vcmp.gt.f32.partialorder %v606, 0.5
    %vm623 = vcmp.gt.f32.partialorder %v607, 0.5
    %vm624 = vcmp.gt.f32.partialorder %v608, 0.5
    %vm625 = vcmp.gt.f32.partialorder %v609, 0.5
    %vm626 = vcmp.gt.f32.partialorder %v610, 0.5
    %vm627 = vcmp.gt.f32.partialorder %v611, 0.5
    %v628 = vsel %vm612, 1, 0
    %v629 = vsel %vm613, 1, 0
    %v630 = vsel %vm614, 1, 0
    %v631 = vsel %vm615, 1, 0
    %v632 = vsel %vm616, 1, 0
    %v633 = vsel %vm617, 1, 0
    %v634 = vsel %vm618, 1, 0
    %v635 = vsel %vm619, 1, 0
    %v636 = vsel %vm620, 1, 0
    %v637 = vsel %vm621, 1, 0
    %v638 = vsel %vm622, 1, 0
    %v639 = vsel %vm623, 1, 0
    %v640 = vsel %vm624, 1, 0
    %v641 = vsel %vm625, 1, 0
    %v642 = vsel %vm626, 1, 0
    %v643 = vsel %vm627, 1, 0
    %644 = vset.pattern.permute.xlu0 0
    %645 = vperm.xlu0 %644, %v628
    %v646 = vpop.permute.xlu0 %645
    %647 = vset.pattern.permute.xlu0 0
    %648 = vperm.xlu0 %647, %v629
    %v649 = vpop.permute.xlu0 %648
    %650 = vset.pattern.permute.xlu0 0
    %651 = vperm.xlu0 %650, %v630
    %v652 = vpop.permute.xlu0 %651
    %653 = vset.pattern.permute.xlu0 0
    %654 = vperm.xlu0 %653, %v631
    %v655 = vpop.permute.xlu0 %654
    %656 = vset.pattern.permute.xlu0 0
    %657 = vperm.xlu0 %656, %v632
    %v658 = vpop.permute.xlu0 %657
    %659 = vset.pattern.permute.xlu0 0
    %660 = vperm.xlu0 %659, %v633
    %v661 = vpop.permute.xlu0 %660
    %662 = vset.pattern.permute.xlu0 0
    %663 = vperm.xlu0 %662, %v634
    %v664 = vpop.permute.xlu0 %663
    %665 = vset.pattern.permute.xlu0 0
    %666 = vperm.xlu0 %665, %v635
    %v667 = vpop.permute.xlu0 %666
    %668 = vset.pattern.permute.xlu0 0
    %669 = vperm.xlu0 %668, %v636
    %v670 = vpop.permute.xlu0 %669
    %671 = vset.pattern.permute.xlu0 0
    %672 = vperm.xlu0 %671, %v637
    %v673 = vpop.permute.xlu0 %672
    %674 = vset.pattern.permute.xlu0 0
    %675 = vperm.xlu0 %674, %v638
    %v676 = vpop.permute.xlu0 %675
    %677 = vset.pattern.permute.xlu0 0
    %678 = vperm.xlu0 %677, %v639
    %v679 = vpop.permute.xlu0 %678
    %680 = vset.pattern.permute.xlu0 0
    %681 = vperm.xlu0 %680, %v640
    %v682 = vpop.permute.xlu0 %681
    %683 = vset.pattern.permute.xlu0 0
    %684 = vperm.xlu0 %683, %v641
    %v685 = vpop.permute.xlu0 %684
    %686 = vset.pattern.permute.xlu0 0
    %687 = vperm.xlu0 %686, %v642
    %v688 = vpop.permute.xlu0 %687
    %689 = vset.pattern.permute.xlu0 0
    %690 = vperm.xlu0 %689, %v643
    %v691 = vpop.permute.xlu0 %690
    %vm692 = vcmp.eq.s32.totalorder %v646, 1
    %vm693 = vcmp.eq.s32.totalorder %v649, 1
    %vm694 = vcmp.eq.s32.totalorder %v652, 1
    %vm695 = vcmp.eq.s32.totalorder %v655, 1
    %vm696 = vcmp.eq.s32.totalorder %v658, 1
    %vm697 = vcmp.eq.s32.totalorder %v661, 1
    %vm698 = vcmp.eq.s32.totalorder %v664, 1
    %vm699 = vcmp.eq.s32.totalorder %v667, 1
    %vm700 = vcmp.eq.s32.totalorder %v670, 1
    %vm701 = vcmp.eq.s32.totalorder %v673, 1
    %vm702 = vcmp.eq.s32.totalorder %v676, 1
    %vm703 = vcmp.eq.s32.totalorder %v679, 1
    %vm704 = vcmp.eq.s32.totalorder %v682, 1
    %vm705 = vcmp.eq.s32.totalorder %v685, 1
    %vm706 = vcmp.eq.s32.totalorder %v688, 1
    %vm707 = vcmp.eq.s32.totalorder %v691, 1
    %v708 = vsel %vm692, %v580, -1e+30
    %v709 = vsel %vm693, %v581, -1e+30
    %v710 = vsel %vm694, %v582, -1e+30
    %v711 = vsel %vm695, %v583, -1e+30
    %v712 = vsel %vm696, %v584, -1e+30
    %v713 = vsel %vm697, %v585, -1e+30
    %v714 = vsel %vm698, %v586, -1e+30
    %v715 = vsel %vm699, %v587, -1e+30
    %v716 = vsel %vm700, %v588, -1e+30
    %v717 = vsel %vm701, %v589, -1e+30
    %v718 = vsel %vm702, %v590, -1e+30
    %v719 = vsel %vm703, %v591, -1e+30
    %v720 = vsel %vm704, %v592, -1e+30
    %v721 = vsel %vm705, %v593, -1e+30
    %v722 = vsel %vm706, %v594, -1e+30
    %v723 = vsel %vm707, %v595, -1e+30
    %s724 = scalar_lea.vmem %s1, 128
    %v725 = vld [vmem:[%s724] sm:$0xff]
    %v726 = vld [vmem:[%s724 + $0x8] sm:$0xff]
    %v727 = vld [vmem:[%s724 + $0x10] sm:$0xff]
    %v728 = vld [vmem:[%s724 + $0x18] sm:$0xff]
    %v729 = vld [vmem:[%s724 + $0x20] sm:$0xff]
    %v730 = vld [vmem:[%s724 + $0x28] sm:$0xff]
    %v731 = vld [vmem:[%s724 + $0x30] sm:$0xff]
    %v732 = vld [vmem:[%s724 + $0x38] sm:$0xff]
    %v733 = vld [vmem:[%s724 + $0x40] sm:$0xff]
    %v734 = vld [vmem:[%s724 + $0x48] sm:$0xff]
    %v735 = vld [vmem:[%s724 + $0x50] sm:$0xff]
    %v736 = vld [vmem:[%s724 + $0x58] sm:$0xff]
    %v737 = vld [vmem:[%s724 + $0x60] sm:$0xff]
    %v738 = vld [vmem:[%s724 + $0x68] sm:$0xff]
    %v739 = vld [vmem:[%s724 + $0x70] sm:$0xff]
    %v740 = vld [vmem:[%s724 + $0x78] sm:$0xff]
    %741 = vmatpush.msra.mxu0 %v272
    %742 = vmatpush.msra.mxu0 %v271
    %743 = vmatpush.msra.mxu0 %v270
    %744 = vmatpush.msra.mxu0 %v269
    %745 = vmatpush.msra.mxu0 %v268
    %746 = vmatpush.msra.mxu0 %v267
    %747 = vmatpush.msra.mxu0 %v266
    %748 = vmatpush.msra.mxu0 %v265
    %749 = vmatpush.msra.mxu0 %v264
    %750 = vmatpush.msra.mxu0 %v263
    %751 = vmatpush.msra.mxu0 %v262
    %752 = vmatpush.msra.mxu0 %v261
    %753 = vmatpush.msra.mxu0 %v260
    %754 = vmatpush.msra.mxu0 %v259
    %755 = vmatpush.msra.mxu0 %v258
    %756 = vmatpush.msra.mxu0 %v257
    %757 = vmatmul.f32.gmra.mxu0 %v725
    %v758 = vpop.f32.mrf.mxu0
    %v759 = vadd.f32 %v194, %v758
    %760 = vmatmul.f32.gmra.mxu0 %v726
    %v761 = vpop.f32.mrf.mxu0
    %v762 = vadd.f32 %v197, %v761
    %763 = vmatmul.f32.gmra.mxu0 %v727
    %v764 = vpop.f32.mrf.mxu0
    %v765 = vadd.f32 %v200, %v764
    %766 = vmatmul.f32.gmra.mxu0 %v728
    %v767 = vpop.f32.mrf.mxu0
    %v768 = vadd.f32 %v203, %v767
    %769 = vmatmul.f32.gmra.mxu0 %v729
    %v770 = vpop.f32.mrf.mxu0
    %v771 = vadd.f32 %v206, %v770
    %772 = vmatmul.f32.gmra.mxu0 %v730
    %v773 = vpop.f32.mrf.mxu0
    %v774 = vadd.f32 %v209, %v773
    %775 = vmatmul.f32.gmra.mxu0 %v731
    %v776 = vpop.f32.mrf.mxu0
    %v777 = vadd.f32 %v212, %v776
    %778 = vmatmul.f32.gmra.mxu0 %v732
    %v779 = vpop.f32.mrf.mxu0
    %v780 = vadd.f32 %v215, %v779
    %781 = vmatmul.f32.gmra.mxu0 %v733
    %v782 = vpop.f32.mrf.mxu0
    %v783 = vadd.f32 %v218, %v782
    %784 = vmatmul.f32.gmra.mxu0 %v734
    %v785 = vpop.f32.mrf.mxu0
    %v786 = vadd.f32 %v221, %v785
    %787 = vmatmul.f32.gmra.mxu0 %v735
    %v788 = vpop.f32.mrf.mxu0
    %v789 = vadd.f32 %v224, %v788
    %790 = vmatmul.f32.gmra.mxu0 %v736
    %v791 = vpop.f32.mrf.mxu0
    %v792 = vadd.f32 %v227, %v791
    %793 = vmatmul.f32.gmra.mxu0 %v737
    %v794 = vpop.f32.mrf.mxu0
    %v795 = vadd.f32 %v230, %v794
    %796 = vmatmul.f32.gmra.mxu0 %v738
    %v797 = vpop.f32.mrf.mxu0
    %v798 = vadd.f32 %v233, %v797
    %799 = vmatmul.f32.gmra.mxu0 %v739
    %v800 = vpop.f32.mrf.mxu0
    %v801 = vadd.f32 %v236, %v800
    %802 = vmatmul.f32.gmra.mxu0 %v740
    %v803 = vpop.f32.mrf.mxu0
    %v804 = vadd.f32 %v239, %v803
    %805 = vdwg.mxu0
    %v806 = vmax.f32 %v759, 0.0
    %v807 = vmax.f32 %v762, 0.0
    %v808 = vmax.f32 %v765, 0.0
    %v809 = vmax.f32 %v768, 0.0
    %v810 = vmax.f32 %v771, 0.0
    %v811 = vmax.f32 %v774, 0.0
    %v812 = vmax.f32 %v777, 0.0
    %v813 = vmax.f32 %v780, 0.0
    %v814 = vmax.f32 %v783, 0.0
    %v815 = vmax.f32 %v786, 0.0
    %v816 = vmax.f32 %v789, 0.0
    %v817 = vmax.f32 %v792, 0.0
    %v818 = vmax.f32 %v795, 0.0
    %v819 = vmax.f32 %v798, 0.0
    %v820 = vmax.f32 %v801, 0.0
    %v821 = vmax.f32 %v804, 0.0
    %822 = vmatpush.msra.mxu0 %v369
    %823 = vmatpush.msra.mxu0 %v368
    %824 = vmatpush.msra.mxu0 %v367
    %825 = vmatpush.msra.mxu0 %v366
    %826 = vmatpush.msra.mxu0 %v365
    %827 = vmatpush.msra.mxu0 %v364
    %828 = vmatpush.msra.mxu0 %v363
    %829 = vmatpush.msra.mxu0 %v362
    %830 = vmatpush.msra.mxu0 %v361
    %831 = vmatpush.msra.mxu0 %v360
    %832 = vmatpush.msra.mxu0 %v359
    %833 = vmatpush.msra.mxu0 %v358
    %834 = vmatpush.msra.mxu0 %v357
    %835 = vmatpush.msra.mxu0 %v356
    %836 = vmatpush.msra.mxu0 %v355
    %837 = vmatpush.msra.mxu0 %v354
    %838 = vmatmul.f32.gmra.mxu0 %v806
    %v839 = vpop.f32.mrf.mxu0
    %v840 = vadd.f32 %v372, %v839
    %841 = vmatmul.f32.gmra.mxu0 %v807
    %v842 = vpop.f32.mrf.mxu0
    %v843 = vadd.f32 %v372, %v842
    %844 = vmatmul.f32.gmra.mxu0 %v808
    %v845 = vpop.f32.mrf.mxu0
    %v846 = vadd.f32 %v372, %v845
    %847 = vmatmul.f32.gmra.mxu0 %v809
    %v848 = vpop.f32.mrf.mxu0
    %v849 = vadd.f32 %v372, %v848
    %850 = vmatmul.f32.gmra.mxu0 %v810
    %v851 = vpop.f32.mrf.mxu0
    %v852 = vadd.f32 %v372, %v851
    %853 = vmatmul.f32.gmra.mxu0 %v811
    %v854 = vpop.f32.mrf.mxu0
    %v855 = vadd.f32 %v372, %v854
    %856 = vmatmul.f32.gmra.mxu0 %v812
    %v857 = vpop.f32.mrf.mxu0
    %v858 = vadd.f32 %v372, %v857
    %859 = vmatmul.f32.gmra.mxu0 %v813
    %v860 = vpop.f32.mrf.mxu0
    %v861 = vadd.f32 %v372, %v860
    %862 = vmatmul.f32.gmra.mxu0 %v814
    %v863 = vpop.f32.mrf.mxu0
    %v864 = vadd.f32 %v372, %v863
    %865 = vmatmul.f32.gmra.mxu0 %v815
    %v866 = vpop.f32.mrf.mxu0
    %v867 = vadd.f32 %v372, %v866
    %868 = vmatmul.f32.gmra.mxu0 %v816
    %v869 = vpop.f32.mrf.mxu0
    %v870 = vadd.f32 %v372, %v869
    %871 = vmatmul.f32.gmra.mxu0 %v817
    %v872 = vpop.f32.mrf.mxu0
    %v873 = vadd.f32 %v372, %v872
    %874 = vmatmul.f32.gmra.mxu0 %v818
    %v875 = vpop.f32.mrf.mxu0
    %v876 = vadd.f32 %v372, %v875
    %877 = vmatmul.f32.gmra.mxu0 %v819
    %v878 = vpop.f32.mrf.mxu0
    %v879 = vadd.f32 %v372, %v878
    %880 = vmatmul.f32.gmra.mxu0 %v820
    %v881 = vpop.f32.mrf.mxu0
    %v882 = vadd.f32 %v372, %v881
    %883 = vmatmul.f32.gmra.mxu0 %v821
    %v884 = vpop.f32.mrf.mxu0
    %v885 = vadd.f32 %v372, %v884
    %886 = vdwg.mxu0
    %v887 = vmax.f32 %v840, 0.0
    %v888 = vmax.f32 %v843, 0.0
    %v889 = vmax.f32 %v846, 0.0
    %v890 = vmax.f32 %v849, 0.0
    %v891 = vmax.f32 %v852, 0.0
    %v892 = vmax.f32 %v855, 0.0
    %v893 = vmax.f32 %v858, 0.0
    %v894 = vmax.f32 %v861, 0.0
    %v895 = vmax.f32 %v864, 0.0
    %v896 = vmax.f32 %v867, 0.0
    %v897 = vmax.f32 %v870, 0.0
    %v898 = vmax.f32 %v873, 0.0
    %v899 = vmax.f32 %v876, 0.0
    %v900 = vmax.f32 %v879, 0.0
    %v901 = vmax.f32 %v882, 0.0
    %v902 = vmax.f32 %v885, 0.0
    %903 = vmatpush.msra.mxu0 %v470
    %904 = vmatpush.msra.mxu0 %v469
    %905 = vmatpush.msra.mxu0 %v468
    %906 = vmatpush.msra.mxu0 %v467
    %907 = vmatpush.msra.mxu0 %v466
    %908 = vmatpush.msra.mxu0 %v465
    %909 = vmatpush.msra.mxu0 %v464
    %910 = vmatpush.msra.mxu0 %v463
    %911 = vmatpush.msra.mxu0 %v462
    %912 = vmatpush.msra.mxu0 %v461
    %913 = vmatpush.msra.mxu0 %v460
    %914 = vmatpush.msra.mxu0 %v459
    %915 = vmatpush.msra.mxu0 %v458
    %916 = vmatpush.msra.mxu0 %v457
    %917 = vmatpush.msra.mxu0 %v456
    %918 = vmatpush.msra.mxu0 %v455
    %919 = vmatmul.f32.gmra.mxu0 %v887
    %v920 = vpop.f32.mrf.mxu0
    %v921 = vadd.f32 %v473, %v920
    %922 = vmatmul.f32.gmra.mxu0 %v888
    %v923 = vpop.f32.mrf.mxu0
    %v924 = vadd.f32 %v473, %v923
    %925 = vmatmul.f32.gmra.mxu0 %v889
    %v926 = vpop.f32.mrf.mxu0
    %v927 = vadd.f32 %v473, %v926
    %928 = vmatmul.f32.gmra.mxu0 %v890
    %v929 = vpop.f32.mrf.mxu0
    %v930 = vadd.f32 %v473, %v929
    %931 = vmatmul.f32.gmra.mxu0 %v891
    %v932 = vpop.f32.mrf.mxu0
    %v933 = vadd.f32 %v473, %v932
    %934 = vmatmul.f32.gmra.mxu0 %v892
    %v935 = vpop.f32.mrf.mxu0
    %v936 = vadd.f32 %v473, %v935
    %937 = vmatmul.f32.gmra.mxu0 %v893
    %v938 = vpop.f32.mrf.mxu0
    %v939 = vadd.f32 %v473, %v938
    %940 = vmatmul.f32.gmra.mxu0 %v894
    %v941 = vpop.f32.mrf.mxu0
    %v942 = vadd.f32 %v473, %v941
    %943 = vmatmul.f32.gmra.mxu0 %v895
    %v944 = vpop.f32.mrf.mxu0
    %v945 = vadd.f32 %v473, %v944
    %946 = vmatmul.f32.gmra.mxu0 %v896
    %v947 = vpop.f32.mrf.mxu0
    %v948 = vadd.f32 %v473, %v947
    %949 = vmatmul.f32.gmra.mxu0 %v897
    %v950 = vpop.f32.mrf.mxu0
    %v951 = vadd.f32 %v473, %v950
    %952 = vmatmul.f32.gmra.mxu0 %v898
    %v953 = vpop.f32.mrf.mxu0
    %v954 = vadd.f32 %v473, %v953
    %955 = vmatmul.f32.gmra.mxu0 %v899
    %v956 = vpop.f32.mrf.mxu0
    %v957 = vadd.f32 %v473, %v956
    %958 = vmatmul.f32.gmra.mxu0 %v900
    %v959 = vpop.f32.mrf.mxu0
    %v960 = vadd.f32 %v473, %v959
    %961 = vmatmul.f32.gmra.mxu0 %v901
    %v962 = vpop.f32.mrf.mxu0
    %v963 = vadd.f32 %v473, %v962
    %964 = vmatmul.f32.gmra.mxu0 %v902
    %v965 = vpop.f32.mrf.mxu0
    %v966 = vadd.f32 %v473, %v965
    %967 = vdwg.mxu0
    %v968 = vmax.f32 %v921, 0.0
    %v969 = vmax.f32 %v924, 0.0
    %v970 = vmax.f32 %v927, 0.0
    %v971 = vmax.f32 %v930, 0.0
    %v972 = vmax.f32 %v933, 0.0
    %v973 = vmax.f32 %v936, 0.0
    %v974 = vmax.f32 %v939, 0.0
    %v975 = vmax.f32 %v942, 0.0
    %v976 = vmax.f32 %v945, 0.0
    %v977 = vmax.f32 %v948, 0.0
    %v978 = vmax.f32 %v951, 0.0
    %v979 = vmax.f32 %v954, 0.0
    %v980 = vmax.f32 %v957, 0.0
    %v981 = vmax.f32 %v960, 0.0
    %v982 = vmax.f32 %v963, 0.0
    %v983 = vmax.f32 %v966, 0.0
    %v984 = vmul.f32 %v968, %v558
    %v985 = vmul.f32 %v969, %v558
    %v986 = vmul.f32 %v970, %v558
    %v987 = vmul.f32 %v971, %v558
    %v988 = vmul.f32 %v972, %v558
    %v989 = vmul.f32 %v973, %v558
    %v990 = vmul.f32 %v974, %v558
    %v991 = vmul.f32 %v975, %v558
    %v992 = vmul.f32 %v976, %v558
    %v993 = vmul.f32 %v977, %v558
    %v994 = vmul.f32 %v978, %v558
    %v995 = vmul.f32 %v979, %v558
    %v996 = vmul.f32 %v980, %v558
    %v997 = vmul.f32 %v981, %v558
    %v998 = vmul.f32 %v982, %v558
    %v999 = vmul.f32 %v983, %v558
    %v1000 = vadd.f32 %v984, %v578
    %v1001 = vadd.f32 %v985, %v578
    %v1002 = vadd.f32 %v986, %v578
    %v1003 = vadd.f32 %v987, %v578
    %v1004 = vadd.f32 %v988, %v578
    %v1005 = vadd.f32 %v989, %v578
    %v1006 = vadd.f32 %v990, %v578
    %v1007 = vadd.f32 %v991, %v578
    %v1008 = vadd.f32 %v992, %v578
    %v1009 = vadd.f32 %v993, %v578
    %v1010 = vadd.f32 %v994, %v578
    %v1011 = vadd.f32 %v995, %v578
    %v1012 = vadd.f32 %v996, %v578
    %v1013 = vadd.f32 %v997, %v578
    %v1014 = vadd.f32 %v998, %v578
    %v1015 = vadd.f32 %v999, %v578
    %s1016 = scalar_lea.vmem %s2, 128
    %v1017 = vld [vmem:[%s1016] sm:$0xff]
    %v1018 = vld [vmem:[%s1016 + $0x8] sm:$0xff]
    %v1019 = vld [vmem:[%s1016 + $0x10] sm:$0xff]
    %v1020 = vld [vmem:[%s1016 + $0x18] sm:$0xff]
    %v1021 = vld [vmem:[%s1016 + $0x20] sm:$0xff]
    %v1022 = vld [vmem:[%s1016 + $0x28] sm:$0xff]
    %v1023 = vld [vmem:[%s1016 + $0x30] sm:$0xff]
    %v1024 = vld [vmem:[%s1016 + $0x38] sm:$0xff]
    %v1025 = vld [vmem:[%s1016 + $0x40] sm:$0xff]
    %v1026 = vld [vmem:[%s1016 + $0x48] sm:$0xff]
    %v1027 = vld [vmem:[%s1016 + $0x50] sm:$0xff]
    %v1028 = vld [vmem:[%s1016 + $0x58] sm:$0xff]
    %v1029 = vld [vmem:[%s1016 + $0x60] sm:$0xff]
    %v1030 = vld [vmem:[%s1016 + $0x68] sm:$0xff]
    %v1031 = vld [vmem:[%s1016 + $0x70] sm:$0xff]
    %v1032 = vld [vmem:[%s1016 + $0x78] sm:$0xff]
    %vm1033 = vcmp.gt.f32.partialorder %v1017, 0.5
    %vm1034 = vcmp.gt.f32.partialorder %v1018, 0.5
    %vm1035 = vcmp.gt.f32.partialorder %v1019, 0.5
    %vm1036 = vcmp.gt.f32.partialorder %v1020, 0.5
    %vm1037 = vcmp.gt.f32.partialorder %v1021, 0.5
    %vm1038 = vcmp.gt.f32.partialorder %v1022, 0.5
    %vm1039 = vcmp.gt.f32.partialorder %v1023, 0.5
    %vm1040 = vcmp.gt.f32.partialorder %v1024, 0.5
    %vm1041 = vcmp.gt.f32.partialorder %v1025, 0.5
    %vm1042 = vcmp.gt.f32.partialorder %v1026, 0.5
    %vm1043 = vcmp.gt.f32.partialorder %v1027, 0.5
    %vm1044 = vcmp.gt.f32.partialorder %v1028, 0.5
    %vm1045 = vcmp.gt.f32.partialorder %v1029, 0.5
    %vm1046 = vcmp.gt.f32.partialorder %v1030, 0.5
    %vm1047 = vcmp.gt.f32.partialorder %v1031, 0.5
    %vm1048 = vcmp.gt.f32.partialorder %v1032, 0.5
    %v1049 = vsel %vm1033, 1, 0
    %v1050 = vsel %vm1034, 1, 0
    %v1051 = vsel %vm1035, 1, 0
    %v1052 = vsel %vm1036, 1, 0
    %v1053 = vsel %vm1037, 1, 0
    %v1054 = vsel %vm1038, 1, 0
    %v1055 = vsel %vm1039, 1, 0
    %v1056 = vsel %vm1040, 1, 0
    %v1057 = vsel %vm1041, 1, 0
    %v1058 = vsel %vm1042, 1, 0
    %v1059 = vsel %vm1043, 1, 0
    %v1060 = vsel %vm1044, 1, 0
    %v1061 = vsel %vm1045, 1, 0
    %v1062 = vsel %vm1046, 1, 0
    %v1063 = vsel %vm1047, 1, 0
    %v1064 = vsel %vm1048, 1, 0
    %1065 = vset.pattern.permute.xlu0 0
    %1066 = vperm.xlu0 %1065, %v1049
    %v1067 = vpop.permute.xlu0 %1066
    %1068 = vset.pattern.permute.xlu0 0
    %1069 = vperm.xlu0 %1068, %v1050
    %v1070 = vpop.permute.xlu0 %1069
    %1071 = vset.pattern.permute.xlu0 0
    %1072 = vperm.xlu0 %1071, %v1051
    %v1073 = vpop.permute.xlu0 %1072
    %1074 = vset.pattern.permute.xlu0 0
    %1075 = vperm.xlu0 %1074, %v1052
    %v1076 = vpop.permute.xlu0 %1075
    %1077 = vset.pattern.permute.xlu0 0
    %1078 = vperm.xlu0 %1077, %v1053
    %v1079 = vpop.permute.xlu0 %1078
    %1080 = vset.pattern.permute.xlu0 0
    %1081 = vperm.xlu0 %1080, %v1054
    %v1082 = vpop.permute.xlu0 %1081
    %1083 = vset.pattern.permute.xlu0 0
    %1084 = vperm.xlu0 %1083, %v1055
    %v1085 = vpop.permute.xlu0 %1084
    %1086 = vset.pattern.permute.xlu0 0
    %1087 = vperm.xlu0 %1086, %v1056
    %v1088 = vpop.permute.xlu0 %1087
    %1089 = vset.pattern.permute.xlu0 0
    %1090 = vperm.xlu0 %1089, %v1057
    %v1091 = vpop.permute.xlu0 %1090
    %1092 = vset.pattern.permute.xlu0 0
    %1093 = vperm.xlu0 %1092, %v1058
    %v1094 = vpop.permute.xlu0 %1093
    %1095 = vset.pattern.permute.xlu0 0
    %1096 = vperm.xlu0 %1095, %v1059
    %v1097 = vpop.permute.xlu0 %1096
    %1098 = vset.pattern.permute.xlu0 0
    %1099 = vperm.xlu0 %1098, %v1060
    %v1100 = vpop.permute.xlu0 %1099
    %1101 = vset.pattern.permute.xlu0 0
    %1102 = vperm.xlu0 %1101, %v1061
    %v1103 = vpop.permute.xlu0 %1102
    %1104 = vset.pattern.permute.xlu0 0
    %1105 = vperm.xlu0 %1104, %v1062
    %v1106 = vpop.permute.xlu0 %1105
    %1107 = vset.pattern.permute.xlu0 0
    %1108 = vperm.xlu0 %1107, %v1063
    %v1109 = vpop.permute.xlu0 %1108
    %1110 = vset.pattern.permute.xlu0 0
    %1111 = vperm.xlu0 %1110, %v1064
    %v1112 = vpop.permute.xlu0 %1111
    %vm1113 = vcmp.eq.s32.totalorder %v1067, 1
    %vm1114 = vcmp.eq.s32.totalorder %v1070, 1
    %vm1115 = vcmp.eq.s32.totalorder %v1073, 1
    %vm1116 = vcmp.eq.s32.totalorder %v1076, 1
    %vm1117 = vcmp.eq.s32.totalorder %v1079, 1
    %vm1118 = vcmp.eq.s32.totalorder %v1082, 1
    %vm1119 = vcmp.eq.s32.totalorder %v1085, 1
    %vm1120 = vcmp.eq.s32.totalorder %v1088, 1
    %vm1121 = vcmp.eq.s32.totalorder %v1091, 1
    %vm1122 = vcmp.eq.s32.totalorder %v1094, 1
    %vm1123 = vcmp.eq.s32.totalorder %v1097, 1
    %vm1124 = vcmp.eq.s32.totalorder %v1100, 1
    %vm1125 = vcmp.eq.s32.totalorder %v1103, 1
    %vm1126 = vcmp.eq.s32.totalorder %v1106, 1
    %vm1127 = vcmp.eq.s32.totalorder %v1109, 1
    %vm1128 = vcmp.eq.s32.totalorder %v1112, 1
    %v1129 = vsel %vm1113, %v1000, -1e+30
    %v1130 = vsel %vm1114, %v1001, -1e+30
    %v1131 = vsel %vm1115, %v1002, -1e+30
    %v1132 = vsel %vm1116, %v1003, -1e+30
    %v1133 = vsel %vm1117, %v1004, -1e+30
    %v1134 = vsel %vm1118, %v1005, -1e+30
    %v1135 = vsel %vm1119, %v1006, -1e+30
    %v1136 = vsel %vm1120, %v1007, -1e+30
    %v1137 = vsel %vm1121, %v1008, -1e+30
    %v1138 = vsel %vm1122, %v1009, -1e+30
    %v1139 = vsel %vm1123, %v1010, -1e+30
    %v1140 = vsel %vm1124, %v1011, -1e+30
    %v1141 = vsel %vm1125, %v1012, -1e+30
    %v1142 = vsel %vm1126, %v1013, -1e+30
    %v1143 = vsel %vm1127, %v1014, -1e+30
    %v1144 = vsel %vm1128, %v1015, -1e+30
    %v1145 = vmax.f32 %v708, %v1129
    %v1146 = vmax.f32 %v709, %v1130
    %v1147 = vmax.f32 %v710, %v1131
    %v1148 = vmax.f32 %v711, %v1132
    %v1149 = vmax.f32 %v712, %v1133
    %v1150 = vmax.f32 %v713, %v1134
    %v1151 = vmax.f32 %v714, %v1135
    %v1152 = vmax.f32 %v715, %v1136
    %v1153 = vmax.f32 %v716, %v1137
    %v1154 = vmax.f32 %v717, %v1138
    %v1155 = vmax.f32 %v718, %v1139
    %v1156 = vmax.f32 %v719, %v1140
    %v1157 = vmax.f32 %v720, %v1141
    %v1158 = vmax.f32 %v721, %v1142
    %v1159 = vmax.f32 %v722, %v1143
    %v1160 = vmax.f32 %v723, %v1144
    %v1161 = vmax.f32 %v1145, 0.0
    %v1162 = vmax.f32 %v1146, 0.0
    %v1163 = vmax.f32 %v1147, 0.0
    %v1164 = vmax.f32 %v1148, 0.0
    %v1165 = vmax.f32 %v1149, 0.0
    %v1166 = vmax.f32 %v1150, 0.0
    %v1167 = vmax.f32 %v1151, 0.0
    %v1168 = vmax.f32 %v1152, 0.0
    %v1169 = vmax.f32 %v1153, 0.0
    %v1170 = vmax.f32 %v1154, 0.0
    %v1171 = vmax.f32 %v1155, 0.0
    %v1172 = vmax.f32 %v1156, 0.0
    %v1173 = vmax.f32 %v1157, 0.0
    %v1174 = vmax.f32 %v1158, 0.0
    %v1175 = vmax.f32 %v1159, 0.0
    %v1176 = vmax.f32 %v1160, 0.0
    %1177 = vst [vmem:[#allocation13] sm:$0xff] %v1161
    %1178 = vst [vmem:[#allocation13 + $0x8] sm:$0xff] %v1162
    %1179 = vst [vmem:[#allocation13 + $0x10] sm:$0xff] %v1163
    %1180 = vst [vmem:[#allocation13 + $0x18] sm:$0xff] %v1164
    %1181 = vst [vmem:[#allocation13 + $0x20] sm:$0xff] %v1165
    %1182 = vst [vmem:[#allocation13 + $0x28] sm:$0xff] %v1166
    %1183 = vst [vmem:[#allocation13 + $0x30] sm:$0xff] %v1167
    %1184 = vst [vmem:[#allocation13 + $0x38] sm:$0xff] %v1168
    %1185 = vst [vmem:[#allocation13 + $0x40] sm:$0xff] %v1169
    %1186 = vst [vmem:[#allocation13 + $0x48] sm:$0xff] %v1170
    %1187 = vst [vmem:[#allocation13 + $0x50] sm:$0xff] %v1171
    %1188 = vst [vmem:[#allocation13 + $0x58] sm:$0xff] %v1172
    %1189 = vst [vmem:[#allocation13 + $0x60] sm:$0xff] %v1173
    %1190 = vst [vmem:[#allocation13 + $0x68] sm:$0xff] %v1174
    %1191 = vst [vmem:[#allocation13 + $0x70] sm:$0xff] %v1175
    %1192 = vst [vmem:[#allocation13 + $0x78] sm:$0xff] %v1176
    %v1193 = vld [vmem:[#allocation5] sm:$0xff]
    %1194 = vmatpush.msra.mxu0 %v1176
    %1195 = vmatpush.msra.mxu0 %v1175
    %1196 = vmatpush.msra.mxu0 %v1174
    %1197 = vmatpush.msra.mxu0 %v1173
    %1198 = vmatpush.msra.mxu0 %v1172
    %1199 = vmatpush.msra.mxu0 %v1171
    %1200 = vmatpush.msra.mxu0 %v1170
    %1201 = vmatpush.msra.mxu0 %v1169
    %1202 = vmatpush.msra.mxu0 %v1168
    %1203 = vmatpush.msra.mxu0 %v1167
    %1204 = vmatpush.msra.mxu0 %v1166
    %1205 = vmatpush.msra.mxu0 %v1165
    %1206 = vmatpush.msra.mxu0 %v1164
    %1207 = vmatpush.msra.mxu0 %v1163
    %1208 = vmatpush.msra.mxu0 %v1162
    %1209 = vmatpush.msra.mxu0 %v1161
    %1210 = vmatmul.f32.gmra.mxu0 %v1193
    %v1211 = vpop.f32.mrf.mxu0
    %v1212 = vadd.f32 0.0, %v1211
    %1213 = vdwg.mxu0
    %1214 = vst [vmem:[#allocation14] sm:$0xff] %v1212
    // Predicated region
    $region78: #{tpu_custom_call.1} parent=1 // pred_check
      _
    $region79: #{tpu_custom_call.1} parent=1 // pred_check_branch
      %1216 = sbr.rel (0) target = $region81
    $region80: #{tpu_custom_call.1} parent=1 // pred_region
      %1218 = vsyncadd [#allocation4], 0
      %s1219 = sshll.u32 [#allocation13], 4
      %s1220 = int_to_ptr.vmem [resolvable:$true] %s1219
      %s1221 = sshll.u32 %s13, 4
      %s1222 = int_to_ptr.hbm [resolvable:$true] %s1221
      %1227 = dma.vmem_to_hbm [thread:$0]  %s1220, 2048, %s1222, [#allocation4], 128, 128, 8
    $region81: #{tpu_custom_call.1} parent=1 // pred_fallthru
      _
    // Predicated region
    $region82: #{tpu_custom_call.1} parent=1 // pred_check
      _
    $region83: #{tpu_custom_call.1} parent=1 // pred_check_branch
      %1229 = sbr.rel (0) target = $region85
    $region84: #{tpu_custom_call.1} parent=1 // pred_region
      %1231 = vsyncadd [#allocation15], 0
      %s1233 = sshll.u32 [#allocation14], 4
      %s1234 = int_to_ptr.vmem [resolvable:$true] %s1233
      %s1235 = sshll.u32 %s14, 4
      %s1236 = int_to_ptr.hbm [resolvable:$true] %s1235
      %1238 = dma.vmem_to_hbm [thread:$0]  %s1234, 128, %s1236, [#allocation15]
    $region85: #{tpu_custom_call.1} parent=1 // pred_fallthru
      _
    // Predicated region
    $region86: #{tpu_custom_call.1} parent=1 // pred_check
      _
    $region87: #{tpu_custom_call.1} parent=1 // pred_check_branch
      %1240 = sbr.rel (0) target = $region89
    $region88: #{tpu_custom_call.1} parent=1 // pred_region
      %1242 = dma.done [#allocation4], 2048
    $region89: #{tpu_custom_call.1} parent=1 // pred_fallthru
      _
    // Predicated region
    $region90: #{tpu_custom_call.1} parent=1 // pred_check
      _
    $region91: #{tpu_custom_call.1} parent=1 // pred_check_branch
      %1244 = sbr.rel (0) target = $region93
    $region92: #{tpu_custom_call.1} parent=1 // pred_region
      %1246 = dma.done [#allocation15], 128
    $region93: #{tpu_custom_call.1} parent=1 // pred_fallthru
      _
    %1247 = vsyncpa [#allocation3], 1
    %1248 = vsyncpa [#allocation6], 1
    %1249 = vsyncpa [#allocation9], 1
    %1250 = vsyncpa [#allocation12], 1
    %1251 = vsyncpa [#allocation4], 1
    %1252 = vsyncpa [#allocation15], 1

</llo_original>
